<compile_context>
chip_gen: v7x
topology: tpu7x:2x2x1
jax: 0.10.0
libtpu: 0.0.40
codegen_flags: <defaults>
</compile_context>

<pallas_src>
import math

import jax
import jax.numpy as jnp
from jax import lax
from jax.experimental import pallas as pl
from jax.experimental.pallas import tpu as pltpu

# ---- small, module-consistent config -------------------------------------
BATCH = 2
SEQ = 16
HIDDEN_DIM = 32
NUM_HEAD = 2
HEAD_DIM = 16
BLOCK_SIZE = 4          # only used to build the (unused) bigbird mask shapes
QKV_DIM = NUM_HEAD * HEAD_DIM
MASK_PENALTY = -10000.0

# Set to jnp.bfloat16 on v6e/v7x at production sizes (softmax stays f32);
# fp32 default matches autocast(enabled=False)/X.float() semantics.
MXU_DTYPE = jnp.float32


def _bigbird_attn_kernel(x_ref, fm_ref, tm_ref, wqkv_ref, bqkv_ref,
                         wo_ref, bo_ref, out_ref):
    """Single invocation (no grid): whole batch + all weights live in VMEM."""
    # X.float() semantics from the module.
    x = x_ref[...].astype(jnp.float32)                          # (B*S, H)

    # Fused QKV projection: ONE MXU matmul for the whole batch.
    qkv = jnp.dot(x.astype(MXU_DTYPE), wqkv_ref[...].astype(MXU_DTYPE),
                  preferred_element_type=jnp.float32) + bqkv_ref[...]

    # Fold 1/sqrt(head_dim) into Q (O(S*hd) mults instead of O(S^2)).
    scale = 1.0 / math.sqrt(HEAD_DIM)
    q = qkv[:, 0 * QKV_DIM:1 * QKV_DIM] * scale                 # (B*S, nh*hd)
    k = qkv[:, 1 * QKV_DIM:2 * QKV_DIM]
    v = qkv[:, 2 * QKV_DIM:3 * QKV_DIM]

    wo = wo_ref[...].astype(MXU_DTYPE)                          # (nh*hd, H)
    bo = bo_ref[...]                                            # (1, H)

    # Static unroll: BATCH * NUM_HEAD = 4 iterations.  Keep the Python unroll
    # only while B*heads is tiny; at production sizes move batch/heads onto a
    # "parallel" grid axis (v7x 2-TC split) to bound vreg live ranges.
    for b in range(BATCH):
        r0, r1 = b * SEQ, (b + 1) * SEQ
        fm_b = fm_ref[b]                                        # (S, 1)
        tm_b = tm_ref[b]                                        # (1, S)
        penalty = MASK_PENALTY * (1.0 - fm_b * tm_b)            # (S, S)

        acc = jnp.zeros((SEQ, HIDDEN_DIM), jnp.float32)
        for h in range(NUM_HEAD):
            c0, c1 = h * HEAD_DIM, (h + 1) * HEAD_DIM
            qh = q[r0:r1, c0:c1].astype(MXU_DTYPE)              # (S, hd)
            kh = k[r0:r1, c0:c1].astype(MXU_DTYPE)
            vh = v[r0:r1, c0:c1].astype(MXU_DTYPE)

            # q @ k^T via dot_general contracting last dims (no transpose).
            s = lax.dot_general(
                qh, kh, dimension_numbers=(((1,), (1,)), ((), ())),
                preferred_element_type=jnp.float32) + penalty   # (S, S)

            m = jnp.max(s, axis=-1, keepdims=True)
            p = jnp.exp(s - m)
            # EUP reciprocal (separate bundle slot, ~free); covered by 1e-3 tol.
            p = p * pl.reciprocal(jnp.sum(p, axis=-1, keepdims=True),
                                  approx=True)

            ctx = jnp.dot(p.astype(MXU_DTYPE), vh,
                          preferred_element_type=jnp.float32)   # (S, hd)
            # Per-head output-projection accumulation: no head concatenation.
            acc = acc + jnp.dot(ctx.astype(MXU_DTYPE), wo[c0:c1, :],
                                preferred_element_type=jnp.float32)  # (S, H)

        # At production H (multiple of 128) this store is lane-dense for free;
        # here the whole output is ~4 KiB so vst.msk cost is negligible.
        out_ref[r0:r1, :] = (acc + bo).astype(out_ref.dtype)


def bigbird_attention(X, band_mask, from_mask, to_mask, blocked_encoder_mask,
                      params):
    """Wrapper mirroring BigBirdAttention.forward.

    X:                    (B, S, H) float
    band_mask:            (B, 1, max(S//blk-4,1), blk, 3*blk)  (unused, dense path)
    from_mask:            (B, 1, S, 1)
    to_mask:              (B, 1, 1, S)
    blocked_encoder_mask: (B, S//blk, blk)                     (unused, dense path)
    """
    B, S, H = X.shape
    assert (B, S, H) == (BATCH, SEQ, HIDDEN_DIM)

    wq, bq, wk, bk, wv, bv, wo, bo = params

    # Fuse [Wq | Wk | Wv] -> one projection weight/bias (kernel does 1 matmul).
    wqkv = jnp.concatenate([wq, wk, wv], axis=1)                # (H, 3*nh*hd)
    bqkv = jnp.concatenate([bq, bk, bv], axis=1)                # (1, 3*nh*hd)

    x2 = X.reshape(B * S, H)                                    # free XLA reshape
    fm = from_mask.reshape(B, S, 1).astype(jnp.float32)
    tm = to_mask.reshape(B, 1, S).astype(jnp.float32)

    vmem = pl.BlockSpec(memory_space=pltpu.MemorySpace.VMEM)
    out = pl.pallas_call(
        _bigbird_attn_kernel,
        out_shape=jax.ShapeDtypeStruct((B * S, H), jnp.float32),
        in_specs=[vmem] * 7,
        out_specs=vmem,
    )(x2, fm, tm, wqkv, bqkv, wo, bo)
    return out.reshape(B, S, H)


# ------------------------- pure-JAX reference ------------------------------
def _reference(X, from_mask, to_mask, params):
    wq, bq, wk, bk, wv, bv, wo, bo = params
    B, S, H = X.shape
    x = X.astype(jnp.float32)
    q = (x @ wq + bq).reshape(B, S, NUM_HEAD, HEAD_DIM).transpose(0, 2, 1, 3)
    k = (x @ wk + bk).reshape(B, S, NUM_HEAD, HEAD_DIM).transpose(0, 2, 1, 3)
    v = (x @ wv + bv).reshape(B, S, NUM_HEAD, HEAD_DIM).transpose(0, 2, 1, 3)
    mask = (from_mask.reshape(B, 1, S, 1) * to_mask.reshape(B, 1, 1, S))
    scores = jnp.einsum("bhqd,bhkd->bhqk", q, k) / math.sqrt(HEAD_DIM)
    scores = scores + MASK_PENALTY * (1.0 - mask)
    p = jax.nn.softmax(scores, axis=-1)
    ctx = jnp.einsum("bhqk,bhkd->bhqd", p, v)
    ctx = ctx.transpose(0, 2, 1, 3).reshape(B, S, QKV_DIM)
    return ctx @ wo + bo


def _init_params(key):
    ks = jax.random.split(key, 8)

    def lin(kw, kb, fan_in, fan_out):
        bound = 1.0 / math.sqrt(fan_in)
        w = jax.random.uniform(kw, (fan_in, fan_out), jnp.float32, -bound, bound)
        b = jax.random.uniform(kb, (1, fan_out), jnp.float32, -bound, bound)
        return w, b

    wq, bq = lin(ks[0], ks[1], HIDDEN_DIM, QKV_DIM)
    wk, bk = lin(ks[2], ks[3], HIDDEN_DIM, QKV_DIM)
    wv, bv = lin(ks[4], ks[5], HIDDEN_DIM, QKV_DIM)
    wo, bo = lin(ks[6], ks[7], QKV_DIM, HIDDEN_DIM)
    return (wq, bq, wk, bk, wv, bv, wo, bo)


if __name__ == "__main__":
    key = jax.random.PRNGKey(0)
    k_x, k_p = jax.random.split(key)

    X = jax.random.normal(k_x, (BATCH, SEQ, HIDDEN_DIM), jnp.float32)
    params = _init_params(k_p)

    # Padding mask: last 3 tokens of batch 1 are padding.
    pad_mask = jnp.ones((BATCH, SEQ), jnp.float32)
    pad_mask = pad_mask.at[1, SEQ - 3:].set(0.0)

    n_blk = SEQ // BLOCK_SIZE
    blocked_encoder_mask = pad_mask.reshape(BATCH, n_blk, BLOCK_SIZE)
    from_mask = pad_mask.reshape(BATCH, 1, SEQ, 1)
    to_mask = pad_mask.reshape(BATCH, 1, 1, SEQ)
    band_mask = jnp.ones(
        (BATCH, 1, max(n_blk - 4, 1), BLOCK_SIZE, 3 * BLOCK_SIZE), jnp.float32)

    out = bigbird_attention(X, band_mask, from_mask, to_mask,
                            blocked_encoder_mask, params)
    out = jax.block_until_ready(out)

    ref = _reference(X, from_mask, to_mask, params)
    assert out.shape == (BATCH, SEQ, HIDDEN_DIM)
    # Tolerance 1e-3 accounts for pl.reciprocal(approx=True) (~2^-12 rel err).
    assert jnp.allclose(out, ref, atol=1e-3, rtol=1e-3), "mismatch vs JAX reference"
    print("KERNEL_OK")
</pallas_src>

<mosaic_0001>
module attributes {stable_mosaic.version = 11 : i64} {
  func.func @_bigbird_attn_kernel(%arg0: memref<32x32xf32, #tpu.memory_space<vmem>>, %arg1: memref<2x16x1xf32, #tpu.memory_space<vmem>>, %arg2: memref<2x1x16xf32, #tpu.memory_space<vmem>>, %arg3: memref<32x96xf32, #tpu.memory_space<vmem>>, %arg4: memref<1x96xf32, #tpu.memory_space<vmem>>, %arg5: memref<32x32xf32, #tpu.memory_space<vmem>>, %arg6: memref<1x32xf32, #tpu.memory_space<vmem>>, %arg7: memref<32x32xf32, #tpu.memory_space<vmem>>) attributes {dimension_semantics = [], scalar_prefetch = 0 : i64, scratch_operands = 0 : i64, tpu.core_type = #tpu.core_type<tc>} {
    %c0 = arith.constant 0 : index
    %c0_0 = arith.constant 0 : index
    %0 = vector.load %arg0[%c0, %c0_0] : memref<32x32xf32, #tpu.memory_space<vmem>>, vector<32x32xf32>
    %c0_1 = arith.constant 0 : index
    %c0_2 = arith.constant 0 : index
    %1 = vector.load %arg3[%c0_1, %c0_2] : memref<32x96xf32, #tpu.memory_space<vmem>>, vector<32x96xf32>
    %cst = arith.constant dense<0.000000e+00> : vector<32x96xf32>
    %2 = tpu.matmul %0, %1, %cst {dimension_numbers = #tpu.dot_dimension_numbers<[1], [0], [0], [1], [0, 0, 1, 1], [], []>} : vector<32x32xf32>, vector<32x96xf32>, vector<32x96xf32> -> vector<32x96xf32>
    %c0_3 = arith.constant 0 : index
    %c0_4 = arith.constant 0 : index
    %3 = vector.load %arg4[%c0_3, %c0_4] : memref<1x96xf32, #tpu.memory_space<vmem>>, vector<1x96xf32>
    %4 = vector.broadcast %3 : vector<1x96xf32> to vector<32x96xf32>
    %5 = arith.addf %2, %4 : vector<32x96xf32>
    %6 = vector.extract_strided_slice %5 {offsets = [0, 0], sizes = [32, 32], strides = [1, 1]} : vector<32x96xf32> to vector<32x32xf32>
    %cst_5 = arith.constant 2.500000e-01 : f32
    %7 = vector.broadcast %cst_5 : f32 to vector<32x32xf32>
    %8 = arith.mulf %6, %7 : vector<32x32xf32>
    %9 = vector.extract_strided_slice %5 {offsets = [0, 32], sizes = [32, 32], strides = [1, 1]} : vector<32x96xf32> to vector<32x32xf32>
    %10 = vector.extract_strided_slice %5 {offsets = [0, 64], sizes = [32, 32], strides = [1, 1]} : vector<32x96xf32> to vector<32x32xf32>
    %c0_6 = arith.constant 0 : index
    %c0_7 = arith.constant 0 : index
    %11 = vector.load %arg5[%c0_6, %c0_7] : memref<32x32xf32, #tpu.memory_space<vmem>>, vector<32x32xf32>
    %c0_8 = arith.constant 0 : index
    %c0_9 = arith.constant 0 : index
    %12 = vector.load %arg6[%c0_8, %c0_9] : memref<1x32xf32, #tpu.memory_space<vmem>>, vector<1x32xf32>
    %c0_10 = arith.constant 0 : index
    %c0_11 = arith.constant 0 : index
    %c0_12 = arith.constant 0 : index
    %13 = vector.load %arg1[%c0_10, %c0_11, %c0_12] : memref<2x16x1xf32, #tpu.memory_space<vmem>>, vector<1x16x1xf32>
    %14 = vector.shape_cast %13 : vector<1x16x1xf32> to vector<16x1xf32>
    %c0_13 = arith.constant 0 : index
    %c0_14 = arith.constant 0 : index
    %c0_15 = arith.constant 0 : index
    %15 = vector.load %arg2[%c0_13, %c0_14, %c0_15] : memref<2x1x16xf32, #tpu.memory_space<vmem>>, vector<1x1x16xf32>
    %16 = vector.shape_cast %15 : vector<1x1x16xf32> to vector<1x16xf32>
    %17 = vector.broadcast %14 : vector<16x1xf32> to vector<16x16xf32>
    %18 = vector.broadcast %16 : vector<1x16xf32> to vector<16x16xf32>
    %19 = arith.mulf %17, %18 : vector<16x16xf32>
    %cst_16 = arith.constant 1.000000e+00 : f32
    %20 = vector.broadcast %cst_16 : f32 to vector<16x16xf32>
    %21 = arith.subf %20, %19 : vector<16x16xf32>
    %cst_17 = arith.constant -1.000000e+04 : f32
    %22 = vector.broadcast %cst_17 : f32 to vector<16x16xf32>
    %23 = arith.mulf %22, %21 : vector<16x16xf32>
    %cst_18 = arith.constant 0.000000e+00 : f32
    %24 = vector.broadcast %cst_18 : f32 to vector<16x32xf32>
    %25 = vector.extract_strided_slice %8 {offsets = [0, 0], sizes = [16, 16], strides = [1, 1]} : vector<32x32xf32> to vector<16x16xf32>
    %26 = vector.extract_strided_slice %9 {offsets = [0, 0], sizes = [16, 16], strides = [1, 1]} : vector<32x32xf32> to vector<16x16xf32>
    %27 = vector.extract_strided_slice %10 {offsets = [0, 0], sizes = [16, 16], strides = [1, 1]} : vector<32x32xf32> to vector<16x16xf32>
    %cst_19 = arith.constant dense<0.000000e+00> : vector<16x16xf32>
    %28 = tpu.matmul %25, %26, %cst_19 {dimension_numbers = #tpu.dot_dimension_numbers<[1], [1], [0], [0], [0, 0, 1, 0], [], []>} : vector<16x16xf32>, vector<16x16xf32>, vector<16x16xf32> -> vector<16x16xf32>
    %29 = arith.addf %28, %23 : vector<16x16xf32>
    %cst_20 = arith.constant dense<0xFF800000> : vector<16xf32>
    %30 = vector.multi_reduction <maximumf>, %29, %cst_20 [1] : vector<16x16xf32> to vector<16xf32>
    %31 = vector.shape_cast %30 : vector<16xf32> to vector<16x1xf32>
    %32 = vector.broadcast %31 : vector<16x1xf32> to vector<16x16xf32>
    %33 = arith.subf %29, %32 : vector<16x16xf32>
    %34 = math.exp %33 : vector<16x16xf32>
    %cst_21 = arith.constant dense<0.000000e+00> : vector<16xf32>
    %35 = vector.multi_reduction <add>, %34, %cst_21 [1] : vector<16x16xf32> to vector<16xf32>
    %36 = vector.shape_cast %35 : vector<16xf32> to vector<16x1xf32>
    %37 = tpu.reciprocal %36 {approx = true} : vector<16x1xf32> -> vector<16x1xf32>
    %38 = vector.broadcast %37 : vector<16x1xf32> to vector<16x16xf32>
    %39 = arith.mulf %34, %38 : vector<16x16xf32>
    %cst_22 = arith.constant dense<0.000000e+00> : vector<16x16xf32>
    %40 = tpu.matmul %39, %27, %cst_22 {dimension_numbers = #tpu.dot_dimension_numbers<[1], [0], [0], [1], [0, 0, 1, 1], [], []>} : vector<16x16xf32>, vector<16x16xf32>, vector<16x16xf32> -> vector<16x16xf32>
    %41 = vector.extract_strided_slice %11 {offsets = [0, 0], sizes = [16, 32], strides = [1, 1]} : vector<32x32xf32> to vector<16x32xf32>
    %cst_23 = arith.constant dense<0.000000e+00> : vector<16x32xf32>
    %42 = tpu.matmul %40, %41, %cst_23 {dimension_numbers = #tpu.dot_dimension_numbers<[1], [0], [0], [1], [0, 0, 1, 1], [], []>} : vector<16x16xf32>, vector<16x32xf32>, vector<16x32xf32> -> vector<16x32xf32>
    %43 = arith.addf %24, %42 : vector<16x32xf32>
    %44 = vector.extract_strided_slice %8 {offsets = [0, 16], sizes = [16, 16], strides = [1, 1]} : vector<32x32xf32> to vector<16x16xf32>
    %45 = vector.extract_strided_slice %9 {offsets = [0, 16], sizes = [16, 16], strides = [1, 1]} : vector<32x32xf32> to vector<16x16xf32>
    %46 = vector.extract_strided_slice %10 {offsets = [0, 16], sizes = [16, 16], strides = [1, 1]} : vector<32x32xf32> to vector<16x16xf32>
    %cst_24 = arith.constant dense<0.000000e+00> : vector<16x16xf32>
    %47 = tpu.matmul %44, %45, %cst_24 {dimension_numbers = #tpu.dot_dimension_numbers<[1], [1], [0], [0], [0, 0, 1, 0], [], []>} : vector<16x16xf32>, vector<16x16xf32>, vector<16x16xf32> -> vector<16x16xf32>
    %48 = arith.addf %47, %23 : vector<16x16xf32>
    %cst_25 = arith.constant dense<0xFF800000> : vector<16xf32>
    %49 = vector.multi_reduction <maximumf>, %48, %cst_25 [1] : vector<16x16xf32> to vector<16xf32>
    %50 = vector.shape_cast %49 : vector<16xf32> to vector<16x1xf32>
    %51 = vector.broadcast %50 : vector<16x1xf32> to vector<16x16xf32>
    %52 = arith.subf %48, %51 : vector<16x16xf32>
    %53 = math.exp %52 : vector<16x16xf32>
    %cst_26 = arith.constant dense<0.000000e+00> : vector<16xf32>
    %54 = vector.multi_reduction <add>, %53, %cst_26 [1] : vector<16x16xf32> to vector<16xf32>
    %55 = vector.shape_cast %54 : vector<16xf32> to vector<16x1xf32>
    %56 = tpu.reciprocal %55 {approx = true} : vector<16x1xf32> -> vector<16x1xf32>
    %57 = vector.broadcast %56 : vector<16x1xf32> to vector<16x16xf32>
    %58 = arith.mulf %53, %57 : vector<16x16xf32>
    %cst_27 = arith.constant dense<0.000000e+00> : vector<16x16xf32>
    %59 = tpu.matmul %58, %46, %cst_27 {dimension_numbers = #tpu.dot_dimension_numbers<[1], [0], [0], [1], [0, 0, 1, 1], [], []>} : vector<16x16xf32>, vector<16x16xf32>, vector<16x16xf32> -> vector<16x16xf32>
    %60 = vector.extract_strided_slice %11 {offsets = [16, 0], sizes = [16, 32], strides = [1, 1]} : vector<32x32xf32> to vector<16x32xf32>
    %cst_28 = arith.constant dense<0.000000e+00> : vector<16x32xf32>
    %61 = tpu.matmul %59, %60, %cst_28 {dimension_numbers = #tpu.dot_dimension_numbers<[1], [0], [0], [1], [0, 0, 1, 1], [], []>} : vector<16x16xf32>, vector<16x32xf32>, vector<16x32xf32> -> vector<16x32xf32>
    %62 = arith.addf %43, %61 : vector<16x32xf32>
    %63 = vector.broadcast %12 : vector<1x32xf32> to vector<16x32xf32>
    %64 = arith.addf %62, %63 : vector<16x32xf32>
    %c0_29 = arith.constant 0 : index
    %c0_30 = arith.constant 0 : index
    %65 = vector.load %arg7[%c0_29, %c0_30] : memref<32x32xf32, #tpu.memory_space<vmem>>, vector<16x32xf32>
    tpu.vector_store %arg7[%c0_29, %c0_30], %64 {strides = array<i32>} : memref<32x32xf32, #tpu.memory_space<vmem>>, vector<16x32xf32>,
    %c1 = arith.constant 1 : index
    %c0_31 = arith.constant 0 : index
    %c0_32 = arith.constant 0 : index
    %66 = vector.load %arg1[%c1, %c0_31, %c0_32] : memref<2x16x1xf32, #tpu.memory_space<vmem>>, vector<1x16x1xf32>
    %67 = vector.shape_cast %66 : vector<1x16x1xf32> to vector<16x1xf32>
    %c1_33 = arith.constant 1 : index
    %c0_34 = arith.constant 0 : index
    %c0_35 = arith.constant 0 : index
    %68 = vector.load %arg2[%c1_33, %c0_34, %c0_35] : memref<2x1x16xf32, #tpu.memory_space<vmem>>, vector<1x1x16xf32>
    %69 = vector.shape_cast %68 : vector<1x1x16xf32> to vector<1x16xf32>
    %70 = vector.broadcast %67 : vector<16x1xf32> to vector<16x16xf32>
    %71 = vector.broadcast %69 : vector<1x16xf32> to vector<16x16xf32>
    %72 = arith.mulf %70, %71 : vector<16x16xf32>
    %cst_36 = arith.constant 1.000000e+00 : f32
    %73 = vector.broadcast %cst_36 : f32 to vector<16x16xf32>
    %74 = arith.subf %73, %72 : vector<16x16xf32>
    %cst_37 = arith.constant -1.000000e+04 : f32
    %75 = vector.broadcast %cst_37 : f32 to vector<16x16xf32>
    %76 = arith.mulf %75, %74 : vector<16x16xf32>
    %cst_38 = arith.constant 0.000000e+00 : f32
    %77 = vector.broadcast %cst_38 : f32 to vector<16x32xf32>
    %78 = vector.extract_strided_slice %8 {offsets = [16, 0], sizes = [16, 16], strides = [1, 1]} : vector<32x32xf32> to vector<16x16xf32>
    %79 = vector.extract_strided_slice %9 {offsets = [16, 0], sizes = [16, 16], strides = [1, 1]} : vector<32x32xf32> to vector<16x16xf32>
    %80 = vector.extract_strided_slice %10 {offsets = [16, 0], sizes = [16, 16], strides = [1, 1]} : vector<32x32xf32> to vector<16x16xf32>
    %cst_39 = arith.constant dense<0.000000e+00> : vector<16x16xf32>
    %81 = tpu.matmul %78, %79, %cst_39 {dimension_numbers = #tpu.dot_dimension_numbers<[1], [1], [0], [0], [0, 0, 1, 0], [], []>} : vector<16x16xf32>, vector<16x16xf32>, vector<16x16xf32> -> vector<16x16xf32>
    %82 = arith.addf %81, %76 : vector<16x16xf32>
    %cst_40 = arith.constant dense<0xFF800000> : vector<16xf32>
    %83 = vector.multi_reduction <maximumf>, %82, %cst_40 [1] : vector<16x16xf32> to vector<16xf32>
    %84 = vector.shape_cast %83 : vector<16xf32> to vector<16x1xf32>
    %85 = vector.broadcast %84 : vector<16x1xf32> to vector<16x16xf32>
    %86 = arith.subf %82, %85 : vector<16x16xf32>
    %87 = math.exp %86 : vector<16x16xf32>
    %cst_41 = arith.constant dense<0.000000e+00> : vector<16xf32>
    %88 = vector.multi_reduction <add>, %87, %cst_41 [1] : vector<16x16xf32> to vector<16xf32>
    %89 = vector.shape_cast %88 : vector<16xf32> to vector<16x1xf32>
    %90 = tpu.reciprocal %89 {approx = true} : vector<16x1xf32> -> vector<16x1xf32>
    %91 = vector.broadcast %90 : vector<16x1xf32> to vector<16x16xf32>
    %92 = arith.mulf %87, %91 : vector<16x16xf32>
    %cst_42 = arith.constant dense<0.000000e+00> : vector<16x16xf32>
    %93 = tpu.matmul %92, %80, %cst_42 {dimension_numbers = #tpu.dot_dimension_numbers<[1], [0], [0], [1], [0, 0, 1, 1], [], []>} : vector<16x16xf32>, vector<16x16xf32>, vector<16x16xf32> -> vector<16x16xf32>
    %94 = vector.extract_strided_slice %11 {offsets = [0, 0], sizes = [16, 32], strides = [1, 1]} : vector<32x32xf32> to vector<16x32xf32>
    %cst_43 = arith.constant dense<0.000000e+00> : vector<16x32xf32>
    %95 = tpu.matmul %93, %94, %cst_43 {dimension_numbers = #tpu.dot_dimension_numbers<[1], [0], [0], [1], [0, 0, 1, 1], [], []>} : vector<16x16xf32>, vector<16x32xf32>, vector<16x32xf32> -> vector<16x32xf32>
    %96 = arith.addf %77, %95 : vector<16x32xf32>
    %97 = vector.extract_strided_slice %8 {offsets = [16, 16], sizes = [16, 16], strides = [1, 1]} : vector<32x32xf32> to vector<16x16xf32>
    %98 = vector.extract_strided_slice %9 {offsets = [16, 16], sizes = [16, 16], strides = [1, 1]} : vector<32x32xf32> to vector<16x16xf32>
    %99 = vector.extract_strided_slice %10 {offsets = [16, 16], sizes = [16, 16], strides = [1, 1]} : vector<32x32xf32> to vector<16x16xf32>
    %cst_44 = arith.constant dense<0.000000e+00> : vector<16x16xf32>
    %100 = tpu.matmul %97, %98, %cst_44 {dimension_numbers = #tpu.dot_dimension_numbers<[1], [1], [0], [0], [0, 0, 1, 0], [], []>} : vector<16x16xf32>, vector<16x16xf32>, vector<16x16xf32> -> vector<16x16xf32>
    %101 = arith.addf %100, %76 : vector<16x16xf32>
    %cst_45 = arith.constant dense<0xFF800000> : vector<16xf32>
    %102 = vector.multi_reduction <maximumf>, %101, %cst_45 [1] : vector<16x16xf32> to vector<16xf32>
    %103 = vector.shape_cast %102 : vector<16xf32> to vector<16x1xf32>
    %104 = vector.broadcast %103 : vector<16x1xf32> to vector<16x16xf32>
    %105 = arith.subf %101, %104 : vector<16x16xf32>
    %106 = math.exp %105 : vector<16x16xf32>
    %cst_46 = arith.constant dense<0.000000e+00> : vector<16xf32>
    %107 = vector.multi_reduction <add>, %106, %cst_46 [1] : vector<16x16xf32> to vector<16xf32>
    %108 = vector.shape_cast %107 : vector<16xf32> to vector<16x1xf32>
    %109 = tpu.reciprocal %108 {approx = true} : vector<16x1xf32> -> vector<16x1xf32>
    %110 = vector.broadcast %109 : vector<16x1xf32> to vector<16x16xf32>
    %111 = arith.mulf %106, %110 : vector<16x16xf32>
    %cst_47 = arith.constant dense<0.000000e+00> : vector<16x16xf32>
    %112 = tpu.matmul %111, %99, %cst_47 {dimension_numbers = #tpu.dot_dimension_numbers<[1], [0], [0], [1], [0, 0, 1, 1], [], []>} : vector<16x16xf32>, vector<16x16xf32>, vector<16x16xf32> -> vector<16x16xf32>
    %113 = vector.extract_strided_slice %11 {offsets = [16, 0], sizes = [16, 32], strides = [1, 1]} : vector<32x32xf32> to vector<16x32xf32>
    %cst_48 = arith.constant dense<0.000000e+00> : vector<16x32xf32>
    %114 = tpu.matmul %112, %113, %cst_48 {dimension_numbers = #tpu.dot_dimension_numbers<[1], [0], [0], [1], [0, 0, 1, 1], [], []>} : vector<16x16xf32>, vector<16x32xf32>, vector<16x32xf32> -> vector<16x32xf32>
    %115 = arith.addf %96, %114 : vector<16x32xf32>
    %116 = vector.broadcast %12 : vector<1x32xf32> to vector<16x32xf32>
    %117 = arith.addf %115, %116 : vector<16x32xf32>
    %c16 = arith.constant 16 : index
    %c0_49 = arith.constant 0 : index
    %118 = vector.load %arg7[%c16, %c0_49] : memref<32x32xf32, #tpu.memory_space<vmem>>, vector<16x32xf32>
    tpu.vector_store %arg7[%c16, %c0_49], %117 {strides = array<i32>} : memref<32x32xf32, #tpu.memory_space<vmem>>, vector<16x32xf32>,
    return
  }
}

</mosaic_0001>

<llo_original>
// kernel: tpu_custom_call.1
$region0: #{tpu_custom_call.1}
  #allocation0 [shape = 'u32[]', space=smem, size = 0x4, offset = 0x4, fixed_abs, tag = 'smem constant byte address 0x4 - core index']
  #allocation1 [shape = 'u32[144,128]{1,0:T(1,128)}', space=vmem, size = 0x12000, scoped, tag = 'internal scratch']
  %s0 = inlined_call_operand.vmem [shape: f32[32,32], index: 0, kind: input, shape index: {}]
  %s1 = inlined_call_operand.vmem [shape: f32[2,16,1], index: 1, kind: input, shape index: {}]
  %s2 = inlined_call_operand.vmem [shape: f32[2,1,16], index: 2, kind: input, shape index: {}]
  %s3 = inlined_call_operand.hbm [shape: f32[32,96], index: 3, kind: input, shape index: {}]
  %s4 = inlined_call_operand.vmem [shape: f32[1,96], index: 4, kind: input, shape index: {}]
  %s5 = inlined_call_operand.hbm [shape: f32[32,32], index: 5, kind: input, shape index: {}]
  %s6 = inlined_call_operand.vmem [shape: f32[1,32], index: 6, kind: input, shape index: {}]
  %s7 = inlined_call_operand.hbm [shape: f32[32,32], index: 7, kind: output, shape index: {}]
  %s8 = sld [smem:[#allocation0]]
  $region46: #{tpu_custom_call.1} parent=0
    _
  %s10 = ssub.s32 1, %s8
  %s11 = scalar_select 0, %s10, %s8
  $region1: #{tpu_custom_call.1} parent=0
    #allocation2 [shape = 'u8[16384]{0}', space=vmem, size = 0x4000, scoped, tag = 'input window, operand 3, single buffered']
    #allocation3 [shape = 's32[1]{0}', space=sflag, size = 0x4, scoped, tag = 'scoped memory for tpu_custom_call.1']
    #allocation4 [shape = 's32[1]{0}', space=sflag, size = 0x4, scoped, tag = 'scoped memory for tpu_custom_call.1']
    #allocation5 [shape = 'u8[16384]{0}', space=vmem, size = 0x4000, scoped, tag = 'input window, operand 5, single buffered']
    #allocation6 [shape = 's32[1]{0}', space=sflag, size = 0x4, scoped, tag = 'scoped memory for tpu_custom_call.1']
    #allocation7 [shape = 'u8[16384]{0}', space=vmem, size = 0x4000, scoped, tag = 'output window, operand 0, single buffered']
    %12 = vsyncpa [#allocation3], 0
    %13 = vsyncpa [#allocation6], 0
    %14 = vsyncpa [#allocation4], 0
    // Predicated region
    $region2: #{tpu_custom_call.1} parent=1 // pred_check
      _
    $region3: #{tpu_custom_call.1} parent=1 // pred_check_branch
      %16 = sbr.rel (0) target = $region5
    $region4: #{tpu_custom_call.1} parent=1 // pred_region
      _
    $region5: #{tpu_custom_call.1} parent=1 // pred_fallthru
      _
    // Predicated region
    $region6: #{tpu_custom_call.1} parent=1 // pred_check
      _
    $region7: #{tpu_custom_call.1} parent=1 // pred_check_branch
      %18 = sbr.rel (0) target = $region9
    $region8: #{tpu_custom_call.1} parent=1 // pred_region
      _
    $region9: #{tpu_custom_call.1} parent=1 // pred_fallthru
      _
    // Predicated region
    $region10: #{tpu_custom_call.1} parent=1 // pred_check
      _
    $region11: #{tpu_custom_call.1} parent=1 // pred_check_branch
      %20 = sbr.rel (0) target = $region13
    $region12: #{tpu_custom_call.1} parent=1 // pred_region
      _
    $region13: #{tpu_custom_call.1} parent=1 // pred_fallthru
      _
    // Predicated region
    $region14: #{tpu_custom_call.1} parent=1 // pred_check
      _
    $region15: #{tpu_custom_call.1} parent=1 // pred_check_branch
      %22 = sbr.rel (0) target = $region17
    $region16: #{tpu_custom_call.1} parent=1 // pred_region
      %s24 = ssub.s32 512, 512
      %25 = vsyncadd [#allocation3], %s24
      %s26 = sshll.u32 [#allocation2], 4
      %s27 = int_to_ptr.vmem [resolvable:$true] %s26
      %32 = dma.hbm_to_vmem [thread:$0]  %s3, 512, %s27, [#allocation3], 128, 128, 8
    $region17: #{tpu_custom_call.1} parent=1 // pred_fallthru
      _
    // Predicated region
    $region18: #{tpu_custom_call.1} parent=1 // pred_check
      _
    $region19: #{tpu_custom_call.1} parent=1 // pred_check_branch
      %34 = sbr.rel (0) target = $region21
    $region20: #{tpu_custom_call.1} parent=1 // pred_region
      _
    $region21: #{tpu_custom_call.1} parent=1 // pred_fallthru
      _
    // Predicated region
    $region22: #{tpu_custom_call.1} parent=1 // pred_check
      _
    $region23: #{tpu_custom_call.1} parent=1 // pred_check_branch
      %36 = sbr.rel (0) target = $region25
    $region24: #{tpu_custom_call.1} parent=1 // pred_region
      %s38 = ssub.s32 512, 512
      %39 = vsyncadd [#allocation6], %s38
      %s40 = sshll.u32 [#allocation5], 4
      %s41 = int_to_ptr.vmem [resolvable:$true] %s40
      %46 = dma.hbm_to_vmem [thread:$0]  %s5, 512, %s41, [#allocation6], 128, 128, 8
    $region25: #{tpu_custom_call.1} parent=1 // pred_fallthru
      _
    // Predicated region
    $region26: #{tpu_custom_call.1} parent=1 // pred_check
      _
    $region27: #{tpu_custom_call.1} parent=1 // pred_check_branch
      %48 = sbr.rel (0) target = $region29
    $region28: #{tpu_custom_call.1} parent=1 // pred_region
      _
    $region29: #{tpu_custom_call.1} parent=1 // pred_fallthru
      _
    // Predicated region
    $region30: #{tpu_custom_call.1} parent=1 // pred_check
      _
    $region31: #{tpu_custom_call.1} parent=1 // pred_check_branch
      %50 = sbr.rel (0) target = $region33
    $region32: #{tpu_custom_call.1} parent=1 // pred_region
      %51 = dma.done [#allocation3], 512
    $region33: #{tpu_custom_call.1} parent=1 // pred_fallthru
      _
    // Predicated region
    $region34: #{tpu_custom_call.1} parent=1 // pred_check
      _
    $region35: #{tpu_custom_call.1} parent=1 // pred_check_branch
      %53 = sbr.rel (0) target = $region37
    $region36: #{tpu_custom_call.1} parent=1 // pred_region
      %54 = dma.done [#allocation6], 512
    $region37: #{tpu_custom_call.1} parent=1 // pred_fallthru
      _
    %v55 = vld [vmem:[%s0] sm:$0xff]
    %v56 = vld [vmem:[%s0 + $0x8] sm:$0xff]
    %v57 = vld [vmem:[%s0 + $0x10] sm:$0xff]
    %v58 = vld [vmem:[%s0 + $0x18] sm:$0xff]
    %v59 = vld [vmem:[#allocation2] sm:$0xff]
    %v60 = vld [vmem:[#allocation2 + $0x8] sm:$0xff]
    %v61 = vld [vmem:[#allocation2 + $0x10] sm:$0xff]
    %v62 = vld [vmem:[#allocation2 + $0x18] sm:$0xff]
    %v63 = vld [vmem:[%s4] sm:$0x1]
    %v65 = vlaneseq
    %v66 = vshrl.u32 %v65, 7
    %v67 = vsub.s32 0, %v66
    %v68 = vrot.slane %v63, %v67
    %vm70 = vcmask 261120
    %v72 = vsel %vm70, %v55, 0
    %v75 = vsel %vm70, %v56, 0
    %v78 = vsel %vm70, %v57, 0
    %v81 = vsel %vm70, %v58, 0
    %83 = vmatprep.subr.mxu0 0.0
    %84 = vmatpush1.msra.mxu0 %v59
    %85 = vmatprep.subr.mxu0 0.0
    %86 = vmatpush1.msra.mxu0 %v60
    %87 = vmatprep.subr.mxu0 0.0
    %88 = vmatpush1.msra.mxu0 %v61
    %89 = vmatprep.subr.mxu0 0.0
    %90 = vmatpush1.msra.mxu0 %v62
    %91 = vmatprep.subr.mxu0 0.0
    %92 = vmatpush1.msra.mxu0 0.0
    %93 = vmatprep.subr.mxu0 0.0
    %94 = vmatpush1.msra.mxu0 0.0
    %95 = vmatprep.subr.mxu0 0.0
    %96 = vmatpush1.msra.mxu0 0.0
    %97 = vmatprep.subr.mxu0 0.0
    %98 = vmatpush1.msra.mxu0 0.0
    %99 = vmatprep.subr.mxu0 0.0
    %100 = vmatpush1.msra.mxu0 0.0
    %101 = vmatprep.subr.mxu0 0.0
    %102 = vmatpush1.msra.mxu0 0.0
    %103 = vmatprep.subr.mxu0 0.0
    %104 = vmatpush1.msra.mxu0 0.0
    %105 = vmatprep.subr.mxu0 0.0
    %106 = vmatpush1.msra.mxu0 0.0
    %107 = vmatprep.subr.mxu0 0.0
    %108 = vmatpush1.msra.mxu0 0.0
    %109 = vmatprep.subr.mxu0 0.0
    %110 = vmatpush1.msra.mxu0 0.0
    %111 = vmatprep.subr.mxu0 0.0
    %112 = vmatpush1.msra.mxu0 0.0
    %113 = vmatprep.subr.mxu0 0.0
    %114 = vmatpush1.msra.mxu0 0.0
    %115 = vmatprep.subr.mxu0 0.0
    %116 = vmatpush1.msra.mxu0 0.0
    %117 = vmatprep.subr.mxu0 0.0
    %118 = vmatpush1.msra.mxu0 0.0
    %119 = vmatprep.subr.mxu0 0.0
    %120 = vmatpush1.msra.mxu0 0.0
    %121 = vmatprep.subr.mxu0 0.0
    %122 = vmatpush1.msra.mxu0 0.0
    %123 = vmatprep.subr.mxu0 0.0
    %124 = vmatpush1.msra.mxu0 0.0
    %125 = vmatprep.subr.mxu0 0.0
    %126 = vmatpush1.msra.mxu0 0.0
    %127 = vmatprep.subr.mxu0 0.0
    %128 = vmatpush1.msra.mxu0 0.0
    %129 = vmatprep.subr.mxu0 0.0
    %130 = vmatpush1.msra.mxu0 0.0
    %131 = vmatprep.subr.mxu0 0.0
    %132 = vmatpush1.msra.mxu0 0.0
    %133 = vmatprep.subr.mxu0 0.0
    %134 = vmatpush1.msra.mxu0 0.0
    %135 = vmatprep.subr.mxu0 0.0
    %136 = vmatpush1.msra.mxu0 0.0
    %137 = vmatprep.subr.mxu0 0.0
    %138 = vmatpush1.msra.mxu0 0.0
    %139 = vmatprep.subr.mxu0 0.0
    %140 = vmatpush1.msra.mxu0 0.0
    %141 = vmatprep.subr.mxu0 0.0
    %142 = vmatpush1.msra.mxu0 0.0
    %143 = vmatprep.subr.mxu0 0.0
    %144 = vmatpush1.msra.mxu0 0.0
    %145 = vmatprep.subr.mxu0 0.0
    %146 = vmatpush1.msra.mxu0 0.0
    %147 = vmatprep.mubr.f32.mxu0 0.0
    %148 = vmatmul.mubr.f32.gmra.mrb[0].mxu0 %v72
    %v149 = vpop.f32.mrb[0].mxu0
    %v150 = vadd.f32 %v68, %v149
    %v151 = vpop.f32.mrb[0].mxu0
    %152 = vmatprep.mubr.f32.mxu0 0.0
    %153 = vmatmul.mubr.f32.gmra.mrb[0].mxu0 %v75
    %v154 = vpop.f32.mrb[0].mxu0
    %v155 = vadd.f32 %v68, %v154
    %v156 = vpop.f32.mrb[0].mxu0
    %157 = vmatprep.mubr.f32.mxu0 0.0
    %158 = vmatmul.mubr.f32.gmra.mrb[0].mxu0 %v78
    %v159 = vpop.f32.mrb[0].mxu0
    %v160 = vadd.f32 %v68, %v159
    %v161 = vpop.f32.mrb[0].mxu0
    %162 = vmatprep.mubr.f32.mxu0 0.0
    %163 = vmatmul.mubr.f32.gmra.mrb[0].mxu0 %v81
    %v164 = vpop.f32.mrb[0].mxu0
    %v165 = vadd.f32 %v68, %v164
    %v166 = vpop.f32.mrb[0].mxu0
    %167 = vdwg.mxu0
    %v168 = vmul.f32 %v150, 0.25
    %v169 = vmul.f32 %v155, 0.25
    %v170 = vmul.f32 %v160, 0.25
    %v171 = vmul.f32 %v165, 0.25
    %v172 = vld [vmem:[#allocation5] sm:$0xff]
    %v173 = vld [vmem:[#allocation5 + $0x8] sm:$0xff]
    %v174 = vld [vmem:[#allocation5 + $0x10] sm:$0xff]
    %v175 = vld [vmem:[#allocation5 + $0x18] sm:$0xff]
    %v176 = vld [vmem:[%s6] sm:$0x1]
    %v177 = vld [vmem:[%s1] sm:$0xff]
    %v178 = vld [vmem:[%s1 + $0x8] sm:$0xff]
    %v179 = vld [vmem:[%s2] sm:$0x1]
    %181 = vset.pattern.permute.xlu0 0
    %182 = vperm.xlu0 %181, %v177
    %v183 = vpop.permute.xlu0 %182
    %186 = vset.pattern.permute.xlu0 0
    %187 = vperm.xlu0 %186, %v178
    %v188 = vpop.permute.xlu0 %187
    %v191 = vlaneseq
    %v192 = vshrl.u32 %v191, 7
    %v193 = vsub.s32 0, %v192
    %v194 = vrot.slane %v179, %v193
    %v196 = vmul.f32 %v183, %v194
    %v197 = vmul.f32 %v188, %v194
    %v198 = vsub.f32 1.0, %v196
    %v199 = vsub.f32 1.0, %v197
    %v200 = vmul.f32 %v198, -10000.0
    %v201 = vmul.f32 %v199, -10000.0
    %204 = vrot.lane.b32.xlu0 %v150, 96
    %v205 = vpop.permute.xlu0 %204
    %206 = vrot.lane.b32.xlu0 %v155, 96
    %v207 = vpop.permute.xlu0 %206
    %vm208 = vcmask 130048
    %v210 = vsel %vm208, %v168, 0
    %v213 = vsel %vm208, %v169, 0
    %v215 = vsel %vm208, %v205, 0
    %v217 = vsel %vm208, %v207, 0
    %219 = vmatprep.subr.mxu0 0.0
    %220 = vmatpush1.xpose.msra.mxu0 %v215
    %221 = vmatprep.subr.mxu0 0.0
    %222 = vmatpush1.xpose.msra.mxu0 %v217
    %223 = vmatprep.subr.mxu0 0.0
    %224 = vmatpush1.xpose.msra.mxu0 0.0
    %225 = vmatprep.subr.mxu0 0.0
    %226 = vmatpush1.xpose.msra.mxu0 0.0
    %227 = vmatprep.subr.mxu0 0.0
    %228 = vmatpush1.xpose.msra.mxu0 0.0
    %229 = vmatprep.subr.mxu0 0.0
    %230 = vmatpush1.xpose.msra.mxu0 0.0
    %231 = vmatprep.subr.mxu0 0.0
    %232 = vmatpush1.xpose.msra.mxu0 0.0
    %233 = vmatprep.subr.mxu0 0.0
    %234 = vmatpush1.xpose.msra.mxu0 0.0
    %235 = vmatprep.subr.mxu0 0.0
    %236 = vmatpush1.xpose.msra.mxu0 0.0
    %237 = vmatprep.subr.mxu0 0.0
    %238 = vmatpush1.xpose.msra.mxu0 0.0
    %239 = vmatprep.subr.mxu0 0.0
    %240 = vmatpush1.xpose.msra.mxu0 0.0
    %241 = vmatprep.subr.mxu0 0.0
    %242 = vmatpush1.xpose.msra.mxu0 0.0
    %243 = vmatprep.subr.mxu0 0.0
    %244 = vmatpush1.xpose.msra.mxu0 0.0
    %245 = vmatprep.subr.mxu0 0.0
    %246 = vmatpush1.xpose.msra.mxu0 0.0
    %247 = vmatprep.subr.mxu0 0.0
    %248 = vmatpush1.xpose.msra.mxu0 0.0
    %249 = vmatprep.subr.mxu0 0.0
    %250 = vmatpush1.xpose.msra.mxu0 0.0
    %251 = vmatprep.subr.mxu0 0.0
    %252 = vmatpush1.xpose.msra.mxu0 0.0
    %253 = vmatprep.subr.mxu0 0.0
    %254 = vmatpush1.xpose.msra.mxu0 0.0
    %255 = vmatprep.subr.mxu0 0.0
    %256 = vmatpush1.xpose.msra.mxu0 0.0
    %257 = vmatprep.subr.mxu0 0.0
    %258 = vmatpush1.xpose.msra.mxu0 0.0
    %259 = vmatprep.subr.mxu0 0.0
    %260 = vmatpush1.xpose.msra.mxu0 0.0
    %261 = vmatprep.subr.mxu0 0.0
    %262 = vmatpush1.xpose.msra.mxu0 0.0
    %263 = vmatprep.subr.mxu0 0.0
    %264 = vmatpush1.xpose.msra.mxu0 0.0
    %265 = vmatprep.subr.mxu0 0.0
    %266 = vmatpush1.xpose.msra.mxu0 0.0
    %267 = vmatprep.subr.mxu0 0.0
    %268 = vmatpush1.xpose.msra.mxu0 0.0
    %269 = vmatprep.subr.mxu0 0.0
    %270 = vmatpush1.xpose.msra.mxu0 0.0
    %271 = vmatprep.subr.mxu0 0.0
    %272 = vmatpush1.xpose.msra.mxu0 0.0
    %273 = vmatprep.subr.mxu0 0.0
    %274 = vmatpush1.xpose.msra.mxu0 0.0
    %275 = vmatprep.subr.mxu0 0.0
    %276 = vmatpush1.xpose.msra.mxu0 0.0
    %277 = vmatprep.subr.mxu0 0.0
    %278 = vmatpush1.xpose.msra.mxu0 0.0
    %279 = vmatprep.subr.mxu0 0.0
    %280 = vmatpush1.xpose.msra.mxu0 0.0
    %281 = vmatprep.subr.mxu0 0.0
    %282 = vmatpush1.xpose.msra.mxu0 0.0
    %283 = vmatprep.mubr.f32.mxu0 0.0
    %284 = vmatmul.mubr.f32.gmra.mrb[0].mxu0 %v210
    %v285 = vpop.f32.mrb[0].mxu0
    %v286 = vadd.f32 %v200, %v285
    %v287 = vpop.f32.mrb[0].mxu0
    %288 = vmatprep.mubr.f32.mxu0 0.0
    %289 = vmatmul.mubr.f32.gmra.mrb[0].mxu0 %v213
    %v290 = vpop.f32.mrb[0].mxu0
    %v291 = vadd.f32 %v201, %v290
    %v292 = vpop.f32.mrb[0].mxu0
    %293 = vdwg.mxu0
    %v294 = vsel %vm208, %v286, -inf
    %295 = vmax.xlane.f32.xlu0 %v294
    %v296 = vpop.xlane.xlu0 %295
    %v297 = vsel %vm208, %v291, -inf
    %298 = vmax.xlane.f32.xlu0 %v297
    %v299 = vpop.xlane.xlu0 %298
    %v300 = vsub.f32 %v286, %v296
    %v301 = vsub.f32 %v291, %v299
    %v302 = vmul.f32 %v300, 1.442695
    %v303 = vpow.pop %v302
    %v304 = vmul.f32 %v301, 1.442695
    %v305 = vpow.pop %v304
    %v306 = vsel %vm208, %v303, 0.0
    %307 = vadd.xlane.f32.xlu0 %v306
    %v308 = vpop.xlane.xlu0 %307
    %v309 = vsel %vm208, %v305, 0.0
    %310 = vadd.xlane.f32.xlu0 %v309
    %v311 = vpop.xlane.xlu0 %310
    %v312 = vrcp.pop %v308
    %v313 = vrcp.pop %v311
    %v314 = vmul.f32 %v303, %v312
    %v315 = vmul.f32 %v305, %v313
    %316 = vrot.lane.b32.xlu0 %v150, 64
    %v317 = vpop.permute.xlu0 %316
    %318 = vrot.lane.b32.xlu0 %v155, 64
    %v319 = vpop.permute.xlu0 %318
    %v323 = vsel %vm208, %v314, 0
    %v326 = vsel %vm208, %v315, 0
    %328 = vmatprep.subr.mxu0 0.0
    %329 = vmatpush1.msra.mxu0 %v317
    %330 = vmatprep.subr.mxu0 0.0
    %331 = vmatpush1.msra.mxu0 %v319
    %332 = vmatprep.subr.mxu0 0.0
    %333 = vmatpush1.msra.mxu0 0.0
    %334 = vmatprep.subr.mxu0 0.0
    %335 = vmatpush1.msra.mxu0 0.0
    %336 = vmatprep.subr.mxu0 0.0
    %337 = vmatpush1.msra.mxu0 0.0
    %338 = vmatprep.subr.mxu0 0.0
    %339 = vmatpush1.msra.mxu0 0.0
    %340 = vmatprep.subr.mxu0 0.0
    %341 = vmatpush1.msra.mxu0 0.0
    %342 = vmatprep.subr.mxu0 0.0
    %343 = vmatpush1.msra.mxu0 0.0
    %344 = vmatprep.subr.mxu0 0.0
    %345 = vmatpush1.msra.mxu0 0.0
    %346 = vmatprep.subr.mxu0 0.0
    %347 = vmatpush1.msra.mxu0 0.0
    %348 = vmatprep.subr.mxu0 0.0
    %349 = vmatpush1.msra.mxu0 0.0
    %350 = vmatprep.subr.mxu0 0.0
    %351 = vmatpush1.msra.mxu0 0.0
    %352 = vmatprep.subr.mxu0 0.0
    %353 = vmatpush1.msra.mxu0 0.0
    %354 = vmatprep.subr.mxu0 0.0
    %355 = vmatpush1.msra.mxu0 0.0
    %356 = vmatprep.subr.mxu0 0.0
    %357 = vmatpush1.msra.mxu0 0.0
    %358 = vmatprep.subr.mxu0 0.0
    %359 = vmatpush1.msra.mxu0 0.0
    %360 = vmatprep.subr.mxu0 0.0
    %361 = vmatpush1.msra.mxu0 0.0
    %362 = vmatprep.subr.mxu0 0.0
    %363 = vmatpush1.msra.mxu0 0.0
    %364 = vmatprep.subr.mxu0 0.0
    %365 = vmatpush1.msra.mxu0 0.0
    %366 = vmatprep.subr.mxu0 0.0
    %367 = vmatpush1.msra.mxu0 0.0
    %368 = vmatprep.subr.mxu0 0.0
    %369 = vmatpush1.msra.mxu0 0.0
    %370 = vmatprep.subr.mxu0 0.0
    %371 = vmatpush1.msra.mxu0 0.0
    %372 = vmatprep.subr.mxu0 0.0
    %373 = vmatpush1.msra.mxu0 0.0
    %374 = vmatprep.subr.mxu0 0.0
    %375 = vmatpush1.msra.mxu0 0.0
    %376 = vmatprep.subr.mxu0 0.0
    %377 = vmatpush1.msra.mxu0 0.0
    %378 = vmatprep.subr.mxu0 0.0
    %379 = vmatpush1.msra.mxu0 0.0
    %380 = vmatprep.subr.mxu0 0.0
    %381 = vmatpush1.msra.mxu0 0.0
    %382 = vmatprep.subr.mxu0 0.0
    %383 = vmatpush1.msra.mxu0 0.0
    %384 = vmatprep.subr.mxu0 0.0
    %385 = vmatpush1.msra.mxu0 0.0
    %386 = vmatprep.subr.mxu0 0.0
    %387 = vmatpush1.msra.mxu0 0.0
    %388 = vmatprep.subr.mxu0 0.0
    %389 = vmatpush1.msra.mxu0 0.0
    %390 = vmatprep.subr.mxu0 0.0
    %391 = vmatpush1.msra.mxu0 0.0
    %392 = vmatprep.mubr.f32.mxu0 0.0
    %393 = vmatmul.mubr.f32.gmra.mrb[0].mxu0 %v323
    %v394 = vpop.f32.mrb[0].mxu0
    %v395 = vadd.f32 0.0, %v394
    %v396 = vpop.f32.mrb[0].mxu0
    %397 = vmatprep.mubr.f32.mxu0 0.0
    %398 = vmatmul.mubr.f32.gmra.mrb[0].mxu0 %v326
    %v399 = vpop.f32.mrb[0].mxu0
    %v400 = vadd.f32 0.0, %v399
    %v401 = vpop.f32.mrb[0].mxu0
    %402 = vdwg.mxu0
    %403 = vrot.lane.b32.xlu0 %v168, 112
    %v404 = vpop.permute.xlu0 %403
    %405 = vrot.lane.b32.xlu0 %v169, 112
    %v406 = vpop.permute.xlu0 %405
    %407 = vrot.lane.b32.xlu0 %v150, 80
    %v408 = vpop.permute.xlu0 %407
    %409 = vrot.lane.b32.xlu0 %v155, 80
    %v410 = vpop.permute.xlu0 %409
    %v411 = vsel %vm208, %v404, 0
    %v413 = vsel %vm208, %v406, 0
    %v415 = vsel %vm208, %v408, 0
    %v417 = vsel %vm208, %v410, 0
    %419 = vmatprep.subr.mxu0 0.0
    %420 = vmatpush1.xpose.msra.mxu0 %v415
    %421 = vmatprep.subr.mxu0 0.0
    %422 = vmatpush1.xpose.msra.mxu0 %v417
    %423 = vmatprep.subr.mxu0 0.0
    %424 = vmatpush1.xpose.msra.mxu0 0.0
    %425 = vmatprep.subr.mxu0 0.0
    %426 = vmatpush1.xpose.msra.mxu0 0.0
    %427 = vmatprep.subr.mxu0 0.0
    %428 = vmatpush1.xpose.msra.mxu0 0.0
    %429 = vmatprep.subr.mxu0 0.0
    %430 = vmatpush1.xpose.msra.mxu0 0.0
    %431 = vmatprep.subr.mxu0 0.0
    %432 = vmatpush1.xpose.msra.mxu0 0.0
    %433 = vmatprep.subr.mxu0 0.0
    %434 = vmatpush1.xpose.msra.mxu0 0.0
    %435 = vmatprep.subr.mxu0 0.0
    %436 = vmatpush1.xpose.msra.mxu0 0.0
    %437 = vmatprep.subr.mxu0 0.0
    %438 = vmatpush1.xpose.msra.mxu0 0.0
    %439 = vmatprep.subr.mxu0 0.0
    %440 = vmatpush1.xpose.msra.mxu0 0.0
    %441 = vmatprep.subr.mxu0 0.0
    %442 = vmatpush1.xpose.msra.mxu0 0.0
    %443 = vmatprep.subr.mxu0 0.0
    %444 = vmatpush1.xpose.msra.mxu0 0.0
    %445 = vmatprep.subr.mxu0 0.0
    %446 = vmatpush1.xpose.msra.mxu0 0.0
    %447 = vmatprep.subr.mxu0 0.0
    %448 = vmatpush1.xpose.msra.mxu0 0.0
    %449 = vmatprep.subr.mxu0 0.0
    %450 = vmatpush1.xpose.msra.mxu0 0.0
    %451 = vmatprep.subr.mxu0 0.0
    %452 = vmatpush1.xpose.msra.mxu0 0.0
    %453 = vmatprep.subr.mxu0 0.0
    %454 = vmatpush1.xpose.msra.mxu0 0.0
    %455 = vmatprep.subr.mxu0 0.0
    %456 = vmatpush1.xpose.msra.mxu0 0.0
    %457 = vmatprep.subr.mxu0 0.0
    %458 = vmatpush1.xpose.msra.mxu0 0.0
    %459 = vmatprep.subr.mxu0 0.0
    %460 = vmatpush1.xpose.msra.mxu0 0.0
    %461 = vmatprep.subr.mxu0 0.0
    %462 = vmatpush1.xpose.msra.mxu0 0.0
    %463 = vmatprep.subr.mxu0 0.0
    %464 = vmatpush1.xpose.msra.mxu0 0.0
    %465 = vmatprep.subr.mxu0 0.0
    %466 = vmatpush1.xpose.msra.mxu0 0.0
    %467 = vmatprep.subr.mxu0 0.0
    %468 = vmatpush1.xpose.msra.mxu0 0.0
    %469 = vmatprep.subr.mxu0 0.0
    %470 = vmatpush1.xpose.msra.mxu0 0.0
    %471 = vmatprep.subr.mxu0 0.0
    %472 = vmatpush1.xpose.msra.mxu0 0.0
    %473 = vmatprep.subr.mxu0 0.0
    %474 = vmatpush1.xpose.msra.mxu0 0.0
    %475 = vmatprep.subr.mxu0 0.0
    %476 = vmatpush1.xpose.msra.mxu0 0.0
    %477 = vmatprep.subr.mxu0 0.0
    %478 = vmatpush1.xpose.msra.mxu0 0.0
    %479 = vmatprep.subr.mxu0 0.0
    %480 = vmatpush1.xpose.msra.mxu0 0.0
    %481 = vmatprep.subr.mxu0 0.0
    %482 = vmatpush1.xpose.msra.mxu0 0.0
    %483 = vmatprep.mubr.f32.mxu0 0.0
    %484 = vmatmul.mubr.f32.gmra.mrb[0].mxu0 %v411
    %v485 = vpop.f32.mrb[0].mxu0
    %v486 = vadd.f32 %v200, %v485
    %v487 = vpop.f32.mrb[0].mxu0
    %488 = vmatprep.mubr.f32.mxu0 0.0
    %489 = vmatmul.mubr.f32.gmra.mrb[0].mxu0 %v413
    %v490 = vpop.f32.mrb[0].mxu0
    %v491 = vadd.f32 %v201, %v490
    %v492 = vpop.f32.mrb[0].mxu0
    %493 = vdwg.mxu0
    %v494 = vsel %vm208, %v486, -inf
    %495 = vmax.xlane.f32.xlu0 %v494
    %v496 = vpop.xlane.xlu0 %495
    %v497 = vsel %vm208, %v491, -inf
    %498 = vmax.xlane.f32.xlu0 %v497
    %v499 = vpop.xlane.xlu0 %498
    %v500 = vsub.f32 %v486, %v496
    %v501 = vsub.f32 %v491, %v499
    %v502 = vmul.f32 %v500, 1.442695
    %v503 = vpow.pop %v502
    %v504 = vmul.f32 %v501, 1.442695
    %v505 = vpow.pop %v504
    %v506 = vsel %vm208, %v503, 0.0
    %507 = vadd.xlane.f32.xlu0 %v506
    %v508 = vpop.xlane.xlu0 %507
    %v509 = vsel %vm208, %v505, 0.0
    %510 = vadd.xlane.f32.xlu0 %v509
    %v511 = vpop.xlane.xlu0 %510
    %v512 = vrcp.pop %v508
    %v513 = vrcp.pop %v511
    %v514 = vmul.f32 %v503, %v512
    %v515 = vmul.f32 %v505, %v513
    %516 = vrot.lane.b32.xlu0 %v150, 48
    %v517 = vpop.permute.xlu0 %516
    %518 = vrot.lane.b32.xlu0 %v155, 48
    %v519 = vpop.permute.xlu0 %518
    %v523 = vsel %vm208, %v514, 0
    %v526 = vsel %vm208, %v515, 0
    %528 = vmatprep.subr.mxu0 0.0
    %529 = vmatpush1.msra.mxu0 %v517
    %530 = vmatprep.subr.mxu0 0.0
    %531 = vmatpush1.msra.mxu0 %v519
    %532 = vmatprep.subr.mxu0 0.0
    %533 = vmatpush1.msra.mxu0 0.0
    %534 = vmatprep.subr.mxu0 0.0
    %535 = vmatpush1.msra.mxu0 0.0
    %536 = vmatprep.subr.mxu0 0.0
    %537 = vmatpush1.msra.mxu0 0.0
    %538 = vmatprep.subr.mxu0 0.0
    %539 = vmatpush1.msra.mxu0 0.0
    %540 = vmatprep.subr.mxu0 0.0
    %541 = vmatpush1.msra.mxu0 0.0
    %542 = vmatprep.subr.mxu0 0.0
    %543 = vmatpush1.msra.mxu0 0.0
    %544 = vmatprep.subr.mxu0 0.0
    %545 = vmatpush1.msra.mxu0 0.0
    %546 = vmatprep.subr.mxu0 0.0
    %547 = vmatpush1.msra.mxu0 0.0
    %548 = vmatprep.subr.mxu0 0.0
    %549 = vmatpush1.msra.mxu0 0.0
    %550 = vmatprep.subr.mxu0 0.0
    %551 = vmatpush1.msra.mxu0 0.0
    %552 = vmatprep.subr.mxu0 0.0
    %553 = vmatpush1.msra.mxu0 0.0
    %554 = vmatprep.subr.mxu0 0.0
    %555 = vmatpush1.msra.mxu0 0.0
    %556 = vmatprep.subr.mxu0 0.0
    %557 = vmatpush1.msra.mxu0 0.0
    %558 = vmatprep.subr.mxu0 0.0
    %559 = vmatpush1.msra.mxu0 0.0
    %560 = vmatprep.subr.mxu0 0.0
    %561 = vmatpush1.msra.mxu0 0.0
    %562 = vmatprep.subr.mxu0 0.0
    %563 = vmatpush1.msra.mxu0 0.0
    %564 = vmatprep.subr.mxu0 0.0
    %565 = vmatpush1.msra.mxu0 0.0
    %566 = vmatprep.subr.mxu0 0.0
    %567 = vmatpush1.msra.mxu0 0.0
    %568 = vmatprep.subr.mxu0 0.0
    %569 = vmatpush1.msra.mxu0 0.0
    %570 = vmatprep.subr.mxu0 0.0
    %571 = vmatpush1.msra.mxu0 0.0
    %572 = vmatprep.subr.mxu0 0.0
    %573 = vmatpush1.msra.mxu0 0.0
    %574 = vmatprep.subr.mxu0 0.0
    %575 = vmatpush1.msra.mxu0 0.0
    %576 = vmatprep.subr.mxu0 0.0
    %577 = vmatpush1.msra.mxu0 0.0
    %578 = vmatprep.subr.mxu0 0.0
    %579 = vmatpush1.msra.mxu0 0.0
    %580 = vmatprep.subr.mxu0 0.0
    %581 = vmatpush1.msra.mxu0 0.0
    %582 = vmatprep.subr.mxu0 0.0
    %583 = vmatpush1.msra.mxu0 0.0
    %584 = vmatprep.subr.mxu0 0.0
    %585 = vmatpush1.msra.mxu0 0.0
    %586 = vmatprep.subr.mxu0 0.0
    %587 = vmatpush1.msra.mxu0 0.0
    %588 = vmatprep.subr.mxu0 0.0
    %589 = vmatpush1.msra.mxu0 0.0
    %590 = vmatprep.subr.mxu0 0.0
    %591 = vmatpush1.msra.mxu0 0.0
    %592 = vmatprep.mubr.f32.mxu0 0.0
    %593 = vmatmul.mubr.f32.gmra.mrb[0].mxu0 %v523
    %v594 = vpop.f32.mrb[0].mxu0
    %v595 = vadd.f32 0.0, %v594
    %v596 = vpop.f32.mrb[0].mxu0
    %597 = vmatprep.mubr.f32.mxu0 0.0
    %598 = vmatmul.mubr.f32.gmra.mrb[0].mxu0 %v526
    %v599 = vpop.f32.mrb[0].mxu0
    %v600 = vadd.f32 0.0, %v599
    %v601 = vpop.f32.mrb[0].mxu0
    %602 = vdwg.mxu0
    %v604 = vsel %vm208, %v595, 0
    %v607 = vsel %vm208, %v600, 0
    %609 = vmatprep.subr.mxu0 0.0
    %610 = vmatpush1.msra.mxu0 %v174
    %611 = vmatprep.subr.mxu0 0.0
    %612 = vmatpush1.msra.mxu0 %v175
    %613 = vmatprep.subr.mxu0 0.0
    %614 = vmatpush1.msra.mxu0 0.0
    %615 = vmatprep.subr.mxu0 0.0
    %616 = vmatpush1.msra.mxu0 0.0
    %617 = vmatprep.subr.mxu0 0.0
    %618 = vmatpush1.msra.mxu0 0.0
    %619 = vmatprep.subr.mxu0 0.0
    %620 = vmatpush1.msra.mxu0 0.0
    %621 = vmatprep.subr.mxu0 0.0
    %622 = vmatpush1.msra.mxu0 0.0
    %623 = vmatprep.subr.mxu0 0.0
    %624 = vmatpush1.msra.mxu0 0.0
    %625 = vmatprep.subr.mxu0 0.0
    %626 = vmatpush1.msra.mxu0 0.0
    %627 = vmatprep.subr.mxu0 0.0
    %628 = vmatpush1.msra.mxu0 0.0
    %629 = vmatprep.subr.mxu0 0.0
    %630 = vmatpush1.msra.mxu0 0.0
    %631 = vmatprep.subr.mxu0 0.0
    %632 = vmatpush1.msra.mxu0 0.0
    %633 = vmatprep.subr.mxu0 0.0
    %634 = vmatpush1.msra.mxu0 0.0
    %635 = vmatprep.subr.mxu0 0.0
    %636 = vmatpush1.msra.mxu0 0.0
    %637 = vmatprep.subr.mxu0 0.0
    %638 = vmatpush1.msra.mxu0 0.0
    %639 = vmatprep.subr.mxu0 0.0
    %640 = vmatpush1.msra.mxu0 0.0
    %641 = vmatprep.subr.mxu0 0.0
    %642 = vmatpush1.msra.mxu0 0.0
    %643 = vmatprep.subr.mxu0 0.0
    %644 = vmatpush1.msra.mxu0 0.0
    %645 = vmatprep.subr.mxu0 0.0
    %646 = vmatpush1.msra.mxu0 0.0
    %647 = vmatprep.subr.mxu0 0.0
    %648 = vmatpush1.msra.mxu0 0.0
    %649 = vmatprep.subr.mxu0 0.0
    %650 = vmatpush1.msra.mxu0 0.0
    %651 = vmatprep.subr.mxu0 0.0
    %652 = vmatpush1.msra.mxu0 0.0
    %653 = vmatprep.subr.mxu0 0.0
    %654 = vmatpush1.msra.mxu0 0.0
    %655 = vmatprep.subr.mxu0 0.0
    %656 = vmatpush1.msra.mxu0 0.0
    %657 = vmatprep.subr.mxu0 0.0
    %658 = vmatpush1.msra.mxu0 0.0
    %659 = vmatprep.subr.mxu0 0.0
    %660 = vmatpush1.msra.mxu0 0.0
    %661 = vmatprep.subr.mxu0 0.0
    %662 = vmatpush1.msra.mxu0 0.0
    %663 = vmatprep.subr.mxu0 0.0
    %664 = vmatpush1.msra.mxu0 0.0
    %665 = vmatprep.subr.mxu0 0.0
    %666 = vmatpush1.msra.mxu0 0.0
    %667 = vmatprep.subr.mxu0 0.0
    %668 = vmatpush1.msra.mxu0 0.0
    %669 = vmatprep.subr.mxu0 0.0
    %670 = vmatpush1.msra.mxu0 0.0
    %671 = vmatprep.subr.mxu0 0.0
    %672 = vmatpush1.msra.mxu0 0.0
    %673 = vmatprep.mubr.f32.mxu0 0.0
    %674 = vmatmul.mubr.f32.gmra.mrb[0].mxu0 %v604
    %v675 = vpop.f32.mrb[0].mxu0
    %v676 = vadd.f32 0.0, %v675
    %v677 = vpop.f32.mrb[0].mxu0
    %678 = vmatprep.mubr.f32.mxu0 0.0
    %679 = vmatmul.mubr.f32.gmra.mrb[0].mxu0 %v607
    %v680 = vpop.f32.mrb[0].mxu0
    %v681 = vadd.f32 0.0, %v680
    %v682 = vpop.f32.mrb[0].mxu0
    %683 = vdwg.mxu0
    %v685 = vsel %vm208, %v395, 0
    %v688 = vsel %vm208, %v400, 0
    %690 = vmatprep.subr.mxu0 0.0
    %691 = vmatpush1.msra.mxu0 %v172
    %692 = vmatprep.subr.mxu0 0.0
    %693 = vmatpush1.msra.mxu0 %v173
    %694 = vmatprep.subr.mxu0 0.0
    %695 = vmatpush1.msra.mxu0 0.0
    %696 = vmatprep.subr.mxu0 0.0
    %697 = vmatpush1.msra.mxu0 0.0
    %698 = vmatprep.subr.mxu0 0.0
    %699 = vmatpush1.msra.mxu0 0.0
    %700 = vmatprep.subr.mxu0 0.0
    %701 = vmatpush1.msra.mxu0 0.0
    %702 = vmatprep.subr.mxu0 0.0
    %703 = vmatpush1.msra.mxu0 0.0
    %704 = vmatprep.subr.mxu0 0.0
    %705 = vmatpush1.msra.mxu0 0.0
    %706 = vmatprep.subr.mxu0 0.0
    %707 = vmatpush1.msra.mxu0 0.0
    %708 = vmatprep.subr.mxu0 0.0
    %709 = vmatpush1.msra.mxu0 0.0
    %710 = vmatprep.subr.mxu0 0.0
    %711 = vmatpush1.msra.mxu0 0.0
    %712 = vmatprep.subr.mxu0 0.0
    %713 = vmatpush1.msra.mxu0 0.0
    %714 = vmatprep.subr.mxu0 0.0
    %715 = vmatpush1.msra.mxu0 0.0
    %716 = vmatprep.subr.mxu0 0.0
    %717 = vmatpush1.msra.mxu0 0.0
    %718 = vmatprep.subr.mxu0 0.0
    %719 = vmatpush1.msra.mxu0 0.0
    %720 = vmatprep.subr.mxu0 0.0
    %721 = vmatpush1.msra.mxu0 0.0
    %722 = vmatprep.subr.mxu0 0.0
    %723 = vmatpush1.msra.mxu0 0.0
    %724 = vmatprep.subr.mxu0 0.0
    %725 = vmatpush1.msra.mxu0 0.0
    %726 = vmatprep.subr.mxu0 0.0
    %727 = vmatpush1.msra.mxu0 0.0
    %728 = vmatprep.subr.mxu0 0.0
    %729 = vmatpush1.msra.mxu0 0.0
    %730 = vmatprep.subr.mxu0 0.0
    %731 = vmatpush1.msra.mxu0 0.0
    %732 = vmatprep.subr.mxu0 0.0
    %733 = vmatpush1.msra.mxu0 0.0
    %734 = vmatprep.subr.mxu0 0.0
    %735 = vmatpush1.msra.mxu0 0.0
    %736 = vmatprep.subr.mxu0 0.0
    %737 = vmatpush1.msra.mxu0 0.0
    %738 = vmatprep.subr.mxu0 0.0
    %739 = vmatpush1.msra.mxu0 0.0
    %740 = vmatprep.subr.mxu0 0.0
    %741 = vmatpush1.msra.mxu0 0.0
    %742 = vmatprep.subr.mxu0 0.0
    %743 = vmatpush1.msra.mxu0 0.0
    %744 = vmatprep.subr.mxu0 0.0
    %745 = vmatpush1.msra.mxu0 0.0
    %746 = vmatprep.subr.mxu0 0.0
    %747 = vmatpush1.msra.mxu0 0.0
    %748 = vmatprep.subr.mxu0 0.0
    %749 = vmatpush1.msra.mxu0 0.0
    %750 = vmatprep.subr.mxu0 0.0
    %751 = vmatpush1.msra.mxu0 0.0
    %752 = vmatprep.subr.mxu0 0.0
    %753 = vmatpush1.msra.mxu0 0.0
    %754 = vmatprep.mubr.f32.mxu0 0.0
    %755 = vmatmul.mubr.f32.gmra.mrb[0].mxu0 %v685
    %v756 = vpop.f32.mrb[0].mxu0
    %v757 = vadd.f32 %v676, %v756
    %v758 = vpop.f32.mrb[0].mxu0
    %759 = vmatprep.mubr.f32.mxu0 0.0
    %760 = vmatmul.mubr.f32.gmra.mrb[0].mxu0 %v688
    %v761 = vpop.f32.mrb[0].mxu0
    %v762 = vadd.f32 %v681, %v761
    %v763 = vpop.f32.mrb[0].mxu0
    %764 = vdwg.mxu0
    %v766 = vlaneseq
    %v767 = vshrl.u32 %v766, 7
    %v768 = vsub.s32 0, %v767
    %v769 = vrot.slane %v176, %v768
    %v771 = vadd.f32 %v757, %v769
    %v772 = vadd.f32 %v762, %v769
    %773 = vst.msk [vmem:[#allocation7] sm:$0xff] %vm70, %v771
    %774 = vst.msk [vmem:[#allocation7 + $0x8] sm:$0xff] %vm70, %v772
    %s775 = scalar_lea.vmem %s1, 16
    %v776 = vld [vmem:[%s775] sm:$0xff]
    %v777 = vld [vmem:[%s775 + $0x8] sm:$0xff]
    %s778 = scalar_lea.vmem %s2, 1
    %v779 = vld [vmem:[%s778] sm:$0x1]
    %781 = vset.pattern.permute.xlu0 0
    %782 = vperm.xlu0 %781, %v776
    %v783 = vpop.permute.xlu0 %782
    %786 = vset.pattern.permute.xlu0 0
    %787 = vperm.xlu0 %786, %v777
    %v788 = vpop.permute.xlu0 %787
    %v791 = vlaneseq
    %v792 = vshrl.u32 %v791, 7
    %v793 = vsub.s32 0, %v792
    %v794 = vrot.slane %v779, %v793
    %v796 = vmul.f32 %v783, %v794
    %v797 = vmul.f32 %v788, %v794
    %v798 = vsub.f32 1.0, %v796
    %v799 = vsub.f32 1.0, %v797
    %v800 = vmul.f32 %v798, -10000.0
    %v801 = vmul.f32 %v799, -10000.0
    %804 = vrot.lane.b32.xlu0 %v160, 96
    %v805 = vpop.permute.xlu0 %804
    %806 = vrot.lane.b32.xlu0 %v165, 96
    %v807 = vpop.permute.xlu0 %806
    %v809 = vsel %vm208, %v170, 0
    %v812 = vsel %vm208, %v171, 0
    %v814 = vsel %vm208, %v805, 0
    %v816 = vsel %vm208, %v807, 0
    %818 = vmatprep.subr.mxu0 0.0
    %819 = vmatpush1.xpose.msra.mxu0 %v814
    %820 = vmatprep.subr.mxu0 0.0
    %821 = vmatpush1.xpose.msra.mxu0 %v816
    %822 = vmatprep.subr.mxu0 0.0
    %823 = vmatpush1.xpose.msra.mxu0 0.0
    %824 = vmatprep.subr.mxu0 0.0
    %825 = vmatpush1.xpose.msra.mxu0 0.0
    %826 = vmatprep.subr.mxu0 0.0
    %827 = vmatpush1.xpose.msra.mxu0 0.0
    %828 = vmatprep.subr.mxu0 0.0
    %829 = vmatpush1.xpose.msra.mxu0 0.0
    %830 = vmatprep.subr.mxu0 0.0
    %831 = vmatpush1.xpose.msra.mxu0 0.0
    %832 = vmatprep.subr.mxu0 0.0
    %833 = vmatpush1.xpose.msra.mxu0 0.0
    %834 = vmatprep.subr.mxu0 0.0
    %835 = vmatpush1.xpose.msra.mxu0 0.0
    %836 = vmatprep.subr.mxu0 0.0
    %837 = vmatpush1.xpose.msra.mxu0 0.0
    %838 = vmatprep.subr.mxu0 0.0
    %839 = vmatpush1.xpose.msra.mxu0 0.0
    %840 = vmatprep.subr.mxu0 0.0
    %841 = vmatpush1.xpose.msra.mxu0 0.0
    %842 = vmatprep.subr.mxu0 0.0
    %843 = vmatpush1.xpose.msra.mxu0 0.0
    %844 = vmatprep.subr.mxu0 0.0
    %845 = vmatpush1.xpose.msra.mxu0 0.0
    %846 = vmatprep.subr.mxu0 0.0
    %847 = vmatpush1.xpose.msra.mxu0 0.0
    %848 = vmatprep.subr.mxu0 0.0
    %849 = vmatpush1.xpose.msra.mxu0 0.0
    %850 = vmatprep.subr.mxu0 0.0
    %851 = vmatpush1.xpose.msra.mxu0 0.0
    %852 = vmatprep.subr.mxu0 0.0
    %853 = vmatpush1.xpose.msra.mxu0 0.0
    %854 = vmatprep.subr.mxu0 0.0
    %855 = vmatpush1.xpose.msra.mxu0 0.0
    %856 = vmatprep.subr.mxu0 0.0
    %857 = vmatpush1.xpose.msra.mxu0 0.0
    %858 = vmatprep.subr.mxu0 0.0
    %859 = vmatpush1.xpose.msra.mxu0 0.0
    %860 = vmatprep.subr.mxu0 0.0
    %861 = vmatpush1.xpose.msra.mxu0 0.0
    %862 = vmatprep.subr.mxu0 0.0
    %863 = vmatpush1.xpose.msra.mxu0 0.0
    %864 = vmatprep.subr.mxu0 0.0
    %865 = vmatpush1.xpose.msra.mxu0 0.0
    %866 = vmatprep.subr.mxu0 0.0
    %867 = vmatpush1.xpose.msra.mxu0 0.0
    %868 = vmatprep.subr.mxu0 0.0
    %869 = vmatpush1.xpose.msra.mxu0 0.0
    %870 = vmatprep.subr.mxu0 0.0
    %871 = vmatpush1.xpose.msra.mxu0 0.0
    %872 = vmatprep.subr.mxu0 0.0
    %873 = vmatpush1.xpose.msra.mxu0 0.0
    %874 = vmatprep.subr.mxu0 0.0
    %875 = vmatpush1.xpose.msra.mxu0 0.0
    %876 = vmatprep.subr.mxu0 0.0
    %877 = vmatpush1.xpose.msra.mxu0 0.0
    %878 = vmatprep.subr.mxu0 0.0
    %879 = vmatpush1.xpose.msra.mxu0 0.0
    %880 = vmatprep.subr.mxu0 0.0
    %881 = vmatpush1.xpose.msra.mxu0 0.0
    %882 = vmatprep.mubr.f32.mxu0 0.0
    %883 = vmatmul.mubr.f32.gmra.mrb[0].mxu0 %v809
    %v884 = vpop.f32.mrb[0].mxu0
    %v885 = vadd.f32 %v800, %v884
    %v886 = vpop.f32.mrb[0].mxu0
    %887 = vmatprep.mubr.f32.mxu0 0.0
    %888 = vmatmul.mubr.f32.gmra.mrb[0].mxu0 %v812
    %v889 = vpop.f32.mrb[0].mxu0
    %v890 = vadd.f32 %v801, %v889
    %v891 = vpop.f32.mrb[0].mxu0
    %892 = vdwg.mxu0
    %v893 = vsel %vm208, %v885, -inf
    %894 = vmax.xlane.f32.xlu0 %v893
    %v895 = vpop.xlane.xlu0 %894
    %v896 = vsel %vm208, %v890, -inf
    %897 = vmax.xlane.f32.xlu0 %v896
    %v898 = vpop.xlane.xlu0 %897
    %v899 = vsub.f32 %v885, %v895
    %v900 = vsub.f32 %v890, %v898
    %v901 = vmul.f32 %v899, 1.442695
    %v902 = vpow.pop %v901
    %v903 = vmul.f32 %v900, 1.442695
    %v904 = vpow.pop %v903
    %v905 = vsel %vm208, %v902, 0.0
    %906 = vadd.xlane.f32.xlu0 %v905
    %v907 = vpop.xlane.xlu0 %906
    %v908 = vsel %vm208, %v904, 0.0
    %909 = vadd.xlane.f32.xlu0 %v908
    %v910 = vpop.xlane.xlu0 %909
    %v911 = vrcp.pop %v907
    %v912 = vrcp.pop %v910
    %v913 = vmul.f32 %v902, %v911
    %v914 = vmul.f32 %v904, %v912
    %915 = vrot.lane.b32.xlu0 %v160, 64
    %v916 = vpop.permute.xlu0 %915
    %917 = vrot.lane.b32.xlu0 %v165, 64
    %v918 = vpop.permute.xlu0 %917
    %v922 = vsel %vm208, %v913, 0
    %v925 = vsel %vm208, %v914, 0
    %927 = vmatprep.subr.mxu0 0.0
    %928 = vmatpush1.msra.mxu0 %v916
    %929 = vmatprep.subr.mxu0 0.0
    %930 = vmatpush1.msra.mxu0 %v918
    %931 = vmatprep.subr.mxu0 0.0
    %932 = vmatpush1.msra.mxu0 0.0
    %933 = vmatprep.subr.mxu0 0.0
    %934 = vmatpush1.msra.mxu0 0.0
    %935 = vmatprep.subr.mxu0 0.0
    %936 = vmatpush1.msra.mxu0 0.0
    %937 = vmatprep.subr.mxu0 0.0
    %938 = vmatpush1.msra.mxu0 0.0
    %939 = vmatprep.subr.mxu0 0.0
    %940 = vmatpush1.msra.mxu0 0.0
    %941 = vmatprep.subr.mxu0 0.0
    %942 = vmatpush1.msra.mxu0 0.0
    %943 = vmatprep.subr.mxu0 0.0
    %944 = vmatpush1.msra.mxu0 0.0
    %945 = vmatprep.subr.mxu0 0.0
    %946 = vmatpush1.msra.mxu0 0.0
    %947 = vmatprep.subr.mxu0 0.0
    %948 = vmatpush1.msra.mxu0 0.0
    %949 = vmatprep.subr.mxu0 0.0
    %950 = vmatpush1.msra.mxu0 0.0
    %951 = vmatprep.subr.mxu0 0.0
    %952 = vmatpush1.msra.mxu0 0.0
    %953 = vmatprep.subr.mxu0 0.0
    %954 = vmatpush1.msra.mxu0 0.0
    %955 = vmatprep.subr.mxu0 0.0
    %956 = vmatpush1.msra.mxu0 0.0
    %957 = vmatprep.subr.mxu0 0.0
    %958 = vmatpush1.msra.mxu0 0.0
    %959 = vmatprep.subr.mxu0 0.0
    %960 = vmatpush1.msra.mxu0 0.0
    %961 = vmatprep.subr.mxu0 0.0
    %962 = vmatpush1.msra.mxu0 0.0
    %963 = vmatprep.subr.mxu0 0.0
    %964 = vmatpush1.msra.mxu0 0.0
    %965 = vmatprep.subr.mxu0 0.0
    %966 = vmatpush1.msra.mxu0 0.0
    %967 = vmatprep.subr.mxu0 0.0
    %968 = vmatpush1.msra.mxu0 0.0
    %969 = vmatprep.subr.mxu0 0.0
    %970 = vmatpush1.msra.mxu0 0.0
    %971 = vmatprep.subr.mxu0 0.0
    %972 = vmatpush1.msra.mxu0 0.0
    %973 = vmatprep.subr.mxu0 0.0
    %974 = vmatpush1.msra.mxu0 0.0
    %975 = vmatprep.subr.mxu0 0.0
    %976 = vmatpush1.msra.mxu0 0.0
    %977 = vmatprep.subr.mxu0 0.0
    %978 = vmatpush1.msra.mxu0 0.0
    %979 = vmatprep.subr.mxu0 0.0
    %980 = vmatpush1.msra.mxu0 0.0
    %981 = vmatprep.subr.mxu0 0.0
    %982 = vmatpush1.msra.mxu0 0.0
    %983 = vmatprep.subr.mxu0 0.0
    %984 = vmatpush1.msra.mxu0 0.0
    %985 = vmatprep.subr.mxu0 0.0
    %986 = vmatpush1.msra.mxu0 0.0
    %987 = vmatprep.subr.mxu0 0.0
    %988 = vmatpush1.msra.mxu0 0.0
    %989 = vmatprep.subr.mxu0 0.0
    %990 = vmatpush1.msra.mxu0 0.0
    %991 = vmatprep.mubr.f32.mxu0 0.0
    %992 = vmatmul.mubr.f32.gmra.mrb[0].mxu0 %v922
    %v993 = vpop.f32.mrb[0].mxu0
    %v994 = vadd.f32 0.0, %v993
    %v995 = vpop.f32.mrb[0].mxu0
    %996 = vmatprep.mubr.f32.mxu0 0.0
    %997 = vmatmul.mubr.f32.gmra.mrb[0].mxu0 %v925
    %v998 = vpop.f32.mrb[0].mxu0
    %v999 = vadd.f32 0.0, %v998
    %v1000 = vpop.f32.mrb[0].mxu0
    %1001 = vdwg.mxu0
    %1002 = vrot.lane.b32.xlu0 %v170, 112
    %v1003 = vpop.permute.xlu0 %1002
    %1004 = vrot.lane.b32.xlu0 %v171, 112
    %v1005 = vpop.permute.xlu0 %1004
    %1006 = vrot.lane.b32.xlu0 %v160, 80
    %v1007 = vpop.permute.xlu0 %1006
    %1008 = vrot.lane.b32.xlu0 %v165, 80
    %v1009 = vpop.permute.xlu0 %1008
    %v1010 = vsel %vm208, %v1003, 0
    %v1012 = vsel %vm208, %v1005, 0
    %v1014 = vsel %vm208, %v1007, 0
    %v1016 = vsel %vm208, %v1009, 0
    %1018 = vmatprep.subr.mxu0 0.0
    %1019 = vmatpush1.xpose.msra.mxu0 %v1014
    %1020 = vmatprep.subr.mxu0 0.0
    %1021 = vmatpush1.xpose.msra.mxu0 %v1016
    %1022 = vmatprep.subr.mxu0 0.0
    %1023 = vmatpush1.xpose.msra.mxu0 0.0
    %1024 = vmatprep.subr.mxu0 0.0
    %1025 = vmatpush1.xpose.msra.mxu0 0.0
    %1026 = vmatprep.subr.mxu0 0.0
    %1027 = vmatpush1.xpose.msra.mxu0 0.0
    %1028 = vmatprep.subr.mxu0 0.0
    %1029 = vmatpush1.xpose.msra.mxu0 0.0
    %1030 = vmatprep.subr.mxu0 0.0
    %1031 = vmatpush1.xpose.msra.mxu0 0.0
    %1032 = vmatprep.subr.mxu0 0.0
    %1033 = vmatpush1.xpose.msra.mxu0 0.0
    %1034 = vmatprep.subr.mxu0 0.0
    %1035 = vmatpush1.xpose.msra.mxu0 0.0
    %1036 = vmatprep.subr.mxu0 0.0
    %1037 = vmatpush1.xpose.msra.mxu0 0.0
    %1038 = vmatprep.subr.mxu0 0.0
    %1039 = vmatpush1.xpose.msra.mxu0 0.0
    %1040 = vmatprep.subr.mxu0 0.0
    %1041 = vmatpush1.xpose.msra.mxu0 0.0
    %1042 = vmatprep.subr.mxu0 0.0
    %1043 = vmatpush1.xpose.msra.mxu0 0.0
    %1044 = vmatprep.subr.mxu0 0.0
    %1045 = vmatpush1.xpose.msra.mxu0 0.0
    %1046 = vmatprep.subr.mxu0 0.0
    %1047 = vmatpush1.xpose.msra.mxu0 0.0
    %1048 = vmatprep.subr.mxu0 0.0
    %1049 = vmatpush1.xpose.msra.mxu0 0.0
    %1050 = vmatprep.subr.mxu0 0.0
    %1051 = vmatpush1.xpose.msra.mxu0 0.0
    %1052 = vmatprep.subr.mxu0 0.0
    %1053 = vmatpush1.xpose.msra.mxu0 0.0
    %1054 = vmatprep.subr.mxu0 0.0
    %1055 = vmatpush1.xpose.msra.mxu0 0.0
    %1056 = vmatprep.subr.mxu0 0.0
    %1057 = vmatpush1.xpose.msra.mxu0 0.0
    %1058 = vmatprep.subr.mxu0 0.0
    %1059 = vmatpush1.xpose.msra.mxu0 0.0
    %1060 = vmatprep.subr.mxu0 0.0
    %1061 = vmatpush1.xpose.msra.mxu0 0.0
    %1062 = vmatprep.subr.mxu0 0.0
    %1063 = vmatpush1.xpose.msra.mxu0 0.0
    %1064 = vmatprep.subr.mxu0 0.0
    %1065 = vmatpush1.xpose.msra.mxu0 0.0
    %1066 = vmatprep.subr.mxu0 0.0
    %1067 = vmatpush1.xpose.msra.mxu0 0.0
    %1068 = vmatprep.subr.mxu0 0.0
    %1069 = vmatpush1.xpose.msra.mxu0 0.0
    %1070 = vmatprep.subr.mxu0 0.0
    %1071 = vmatpush1.xpose.msra.mxu0 0.0
    %1072 = vmatprep.subr.mxu0 0.0
    %1073 = vmatpush1.xpose.msra.mxu0 0.0
    %1074 = vmatprep.subr.mxu0 0.0
    %1075 = vmatpush1.xpose.msra.mxu0 0.0
    %1076 = vmatprep.subr.mxu0 0.0
    %1077 = vmatpush1.xpose.msra.mxu0 0.0
    %1078 = vmatprep.subr.mxu0 0.0
    %1079 = vmatpush1.xpose.msra.mxu0 0.0
    %1080 = vmatprep.subr.mxu0 0.0
    %1081 = vmatpush1.xpose.msra.mxu0 0.0
    %1082 = vmatprep.mubr.f32.mxu0 0.0
    %1083 = vmatmul.mubr.f32.gmra.mrb[0].mxu0 %v1010
    %v1084 = vpop.f32.mrb[0].mxu0
    %v1085 = vadd.f32 %v800, %v1084
    %v1086 = vpop.f32.mrb[0].mxu0
    %1087 = vmatprep.mubr.f32.mxu0 0.0
    %1088 = vmatmul.mubr.f32.gmra.mrb[0].mxu0 %v1012
    %v1089 = vpop.f32.mrb[0].mxu0
    %v1090 = vadd.f32 %v801, %v1089
    %v1091 = vpop.f32.mrb[0].mxu0
    %1092 = vdwg.mxu0
    %v1093 = vsel %vm208, %v1085, -inf
    %1094 = vmax.xlane.f32.xlu0 %v1093
    %v1095 = vpop.xlane.xlu0 %1094
    %v1096 = vsel %vm208, %v1090, -inf
    %1097 = vmax.xlane.f32.xlu0 %v1096
    %v1098 = vpop.xlane.xlu0 %1097
    %v1099 = vsub.f32 %v1085, %v1095
    %v1100 = vsub.f32 %v1090, %v1098
    %v1101 = vmul.f32 %v1099, 1.442695
    %v1102 = vpow.pop %v1101
    %v1103 = vmul.f32 %v1100, 1.442695
    %v1104 = vpow.pop %v1103
    %v1105 = vsel %vm208, %v1102, 0.0
    %1106 = vadd.xlane.f32.xlu0 %v1105
    %v1107 = vpop.xlane.xlu0 %1106
    %v1108 = vsel %vm208, %v1104, 0.0
    %1109 = vadd.xlane.f32.xlu0 %v1108
    %v1110 = vpop.xlane.xlu0 %1109
    %v1111 = vrcp.pop %v1107
    %v1112 = vrcp.pop %v1110
    %v1113 = vmul.f32 %v1102, %v1111
    %v1114 = vmul.f32 %v1104, %v1112
    %1115 = vrot.lane.b32.xlu0 %v160, 48
    %v1116 = vpop.permute.xlu0 %1115
    %1117 = vrot.lane.b32.xlu0 %v165, 48
    %v1118 = vpop.permute.xlu0 %1117
    %v1122 = vsel %vm208, %v1113, 0
    %v1125 = vsel %vm208, %v1114, 0
    %1127 = vmatprep.subr.mxu0 0.0
    %1128 = vmatpush1.msra.mxu0 %v1116
    %1129 = vmatprep.subr.mxu0 0.0
    %1130 = vmatpush1.msra.mxu0 %v1118
    %1131 = vmatprep.subr.mxu0 0.0
    %1132 = vmatpush1.msra.mxu0 0.0
    %1133 = vmatprep.subr.mxu0 0.0
    %1134 = vmatpush1.msra.mxu0 0.0
    %1135 = vmatprep.subr.mxu0 0.0
    %1136 = vmatpush1.msra.mxu0 0.0
    %1137 = vmatprep.subr.mxu0 0.0
    %1138 = vmatpush1.msra.mxu0 0.0
    %1139 = vmatprep.subr.mxu0 0.0
    %1140 = vmatpush1.msra.mxu0 0.0
    %1141 = vmatprep.subr.mxu0 0.0
    %1142 = vmatpush1.msra.mxu0 0.0
    %1143 = vmatprep.subr.mxu0 0.0
    %1144 = vmatpush1.msra.mxu0 0.0
    %1145 = vmatprep.subr.mxu0 0.0
    %1146 = vmatpush1.msra.mxu0 0.0
    %1147 = vmatprep.subr.mxu0 0.0
    %1148 = vmatpush1.msra.mxu0 0.0
    %1149 = vmatprep.subr.mxu0 0.0
    %1150 = vmatpush1.msra.mxu0 0.0
    %1151 = vmatprep.subr.mxu0 0.0
    %1152 = vmatpush1.msra.mxu0 0.0
    %1153 = vmatprep.subr.mxu0 0.0
    %1154 = vmatpush1.msra.mxu0 0.0
    %1155 = vmatprep.subr.mxu0 0.0
    %1156 = vmatpush1.msra.mxu0 0.0
    %1157 = vmatprep.subr.mxu0 0.0
    %1158 = vmatpush1.msra.mxu0 0.0
    %1159 = vmatprep.subr.mxu0 0.0
    %1160 = vmatpush1.msra.mxu0 0.0
    %1161 = vmatprep.subr.mxu0 0.0
    %1162 = vmatpush1.msra.mxu0 0.0
    %1163 = vmatprep.subr.mxu0 0.0
    %1164 = vmatpush1.msra.mxu0 0.0
    %1165 = vmatprep.subr.mxu0 0.0
    %1166 = vmatpush1.msra.mxu0 0.0
    %1167 = vmatprep.subr.mxu0 0.0
    %1168 = vmatpush1.msra.mxu0 0.0
    %1169 = vmatprep.subr.mxu0 0.0
    %1170 = vmatpush1.msra.mxu0 0.0
    %1171 = vmatprep.subr.mxu0 0.0
    %1172 = vmatpush1.msra.mxu0 0.0
    %1173 = vmatprep.subr.mxu0 0.0
    %1174 = vmatpush1.msra.mxu0 0.0
    %1175 = vmatprep.subr.mxu0 0.0
    %1176 = vmatpush1.msra.mxu0 0.0
    %1177 = vmatprep.subr.mxu0 0.0
    %1178 = vmatpush1.msra.mxu0 0.0
    %1179 = vmatprep.subr.mxu0 0.0
    %1180 = vmatpush1.msra.mxu0 0.0
    %1181 = vmatprep.subr.mxu0 0.0
    %1182 = vmatpush1.msra.mxu0 0.0
    %1183 = vmatprep.subr.mxu0 0.0
    %1184 = vmatpush1.msra.mxu0 0.0
    %1185 = vmatprep.subr.mxu0 0.0
    %1186 = vmatpush1.msra.mxu0 0.0
    %1187 = vmatprep.subr.mxu0 0.0
    %1188 = vmatpush1.msra.mxu0 0.0
    %1189 = vmatprep.subr.mxu0 0.0
    %1190 = vmatpush1.msra.mxu0 0.0
    %1191 = vmatprep.mubr.f32.mxu0 0.0
    %1192 = vmatmul.mubr.f32.gmra.mrb[0].mxu0 %v1122
    %v1193 = vpop.f32.mrb[0].mxu0
    %v1194 = vadd.f32 0.0, %v1193
    %v1195 = vpop.f32.mrb[0].mxu0
    %1196 = vmatprep.mubr.f32.mxu0 0.0
    %1197 = vmatmul.mubr.f32.gmra.mrb[0].mxu0 %v1125
    %v1198 = vpop.f32.mrb[0].mxu0
    %v1199 = vadd.f32 0.0, %v1198
    %v1200 = vpop.f32.mrb[0].mxu0
    %1201 = vdwg.mxu0
    %v1203 = vsel %vm208, %v1194, 0
    %v1206 = vsel %vm208, %v1199, 0
    %1208 = vmatprep.subr.mxu0 0.0
    %1209 = vmatpush1.msra.mxu0 %v174
    %1210 = vmatprep.subr.mxu0 0.0
    %1211 = vmatpush1.msra.mxu0 %v175
    %1212 = vmatprep.subr.mxu0 0.0
    %1213 = vmatpush1.msra.mxu0 0.0
    %1214 = vmatprep.subr.mxu0 0.0
    %1215 = vmatpush1.msra.mxu0 0.0
    %1216 = vmatprep.subr.mxu0 0.0
    %1217 = vmatpush1.msra.mxu0 0.0
    %1218 = vmatprep.subr.mxu0 0.0
    %1219 = vmatpush1.msra.mxu0 0.0
    %1220 = vmatprep.subr.mxu0 0.0
    %1221 = vmatpush1.msra.mxu0 0.0
    %1222 = vmatprep.subr.mxu0 0.0
    %1223 = vmatpush1.msra.mxu0 0.0
    %1224 = vmatprep.subr.mxu0 0.0
    %1225 = vmatpush1.msra.mxu0 0.0
    %1226 = vmatprep.subr.mxu0 0.0
    %1227 = vmatpush1.msra.mxu0 0.0
    %1228 = vmatprep.subr.mxu0 0.0
    %1229 = vmatpush1.msra.mxu0 0.0
    %1230 = vmatprep.subr.mxu0 0.0
    %1231 = vmatpush1.msra.mxu0 0.0
    %1232 = vmatprep.subr.mxu0 0.0
    %1233 = vmatpush1.msra.mxu0 0.0
    %1234 = vmatprep.subr.mxu0 0.0
    %1235 = vmatpush1.msra.mxu0 0.0
    %1236 = vmatprep.subr.mxu0 0.0
    %1237 = vmatpush1.msra.mxu0 0.0
    %1238 = vmatprep.subr.mxu0 0.0
    %1239 = vmatpush1.msra.mxu0 0.0
    %1240 = vmatprep.subr.mxu0 0.0
    %1241 = vmatpush1.msra.mxu0 0.0
    %1242 = vmatprep.subr.mxu0 0.0
    %1243 = vmatpush1.msra.mxu0 0.0
    %1244 = vmatprep.subr.mxu0 0.0
    %1245 = vmatpush1.msra.mxu0 0.0
    %1246 = vmatprep.subr.mxu0 0.0
    %1247 = vmatpush1.msra.mxu0 0.0
    %1248 = vmatprep.subr.mxu0 0.0
    %1249 = vmatpush1.msra.mxu0 0.0
    %1250 = vmatprep.subr.mxu0 0.0
    %1251 = vmatpush1.msra.mxu0 0.0
    %1252 = vmatprep.subr.mxu0 0.0
    %1253 = vmatpush1.msra.mxu0 0.0
    %1254 = vmatprep.subr.mxu0 0.0
    %1255 = vmatpush1.msra.mxu0 0.0
    %1256 = vmatprep.subr.mxu0 0.0
    %1257 = vmatpush1.msra.mxu0 0.0
    %1258 = vmatprep.subr.mxu0 0.0
    %1259 = vmatpush1.msra.mxu0 0.0
    %1260 = vmatprep.subr.mxu0 0.0
    %1261 = vmatpush1.msra.mxu0 0.0
    %1262 = vmatprep.subr.mxu0 0.0
    %1263 = vmatpush1.msra.mxu0 0.0
    %1264 = vmatprep.subr.mxu0 0.0
    %1265 = vmatpush1.msra.mxu0 0.0
    %1266 = vmatprep.subr.mxu0 0.0
    %1267 = vmatpush1.msra.mxu0 0.0
    %1268 = vmatprep.subr.mxu0 0.0
    %1269 = vmatpush1.msra.mxu0 0.0
    %1270 = vmatprep.subr.mxu0 0.0
    %1271 = vmatpush1.msra.mxu0 0.0
    %1272 = vmatprep.mubr.f32.mxu0 0.0
    %1273 = vmatmul.mubr.f32.gmra.mrb[0].mxu0 %v1203
    %v1274 = vpop.f32.mrb[0].mxu0
    %v1275 = vadd.f32 0.0, %v1274
    %v1276 = vpop.f32.mrb[0].mxu0
    %1277 = vmatprep.mubr.f32.mxu0 0.0
    %1278 = vmatmul.mubr.f32.gmra.mrb[0].mxu0 %v1206
    %v1279 = vpop.f32.mrb[0].mxu0
    %v1280 = vadd.f32 0.0, %v1279
    %v1281 = vpop.f32.mrb[0].mxu0
    %1282 = vdwg.mxu0
    %v1284 = vsel %vm208, %v994, 0
    %v1287 = vsel %vm208, %v999, 0
    %1289 = vmatprep.subr.mxu0 0.0
    %1290 = vmatpush1.msra.mxu0 %v172
    %1291 = vmatprep.subr.mxu0 0.0
    %1292 = vmatpush1.msra.mxu0 %v173
    %1293 = vmatprep.subr.mxu0 0.0
    %1294 = vmatpush1.msra.mxu0 0.0
    %1295 = vmatprep.subr.mxu0 0.0
    %1296 = vmatpush1.msra.mxu0 0.0
    %1297 = vmatprep.subr.mxu0 0.0
    %1298 = vmatpush1.msra.mxu0 0.0
    %1299 = vmatprep.subr.mxu0 0.0
    %1300 = vmatpush1.msra.mxu0 0.0
    %1301 = vmatprep.subr.mxu0 0.0
    %1302 = vmatpush1.msra.mxu0 0.0
    %1303 = vmatprep.subr.mxu0 0.0
    %1304 = vmatpush1.msra.mxu0 0.0
    %1305 = vmatprep.subr.mxu0 0.0
    %1306 = vmatpush1.msra.mxu0 0.0
    %1307 = vmatprep.subr.mxu0 0.0
    %1308 = vmatpush1.msra.mxu0 0.0
    %1309 = vmatprep.subr.mxu0 0.0
    %1310 = vmatpush1.msra.mxu0 0.0
    %1311 = vmatprep.subr.mxu0 0.0
    %1312 = vmatpush1.msra.mxu0 0.0
    %1313 = vmatprep.subr.mxu0 0.0
    %1314 = vmatpush1.msra.mxu0 0.0
    %1315 = vmatprep.subr.mxu0 0.0
    %1316 = vmatpush1.msra.mxu0 0.0
    %1317 = vmatprep.subr.mxu0 0.0
    %1318 = vmatpush1.msra.mxu0 0.0
    %1319 = vmatprep.subr.mxu0 0.0
    %1320 = vmatpush1.msra.mxu0 0.0
    %1321 = vmatprep.subr.mxu0 0.0
    %1322 = vmatpush1.msra.mxu0 0.0
    %1323 = vmatprep.subr.mxu0 0.0
    %1324 = vmatpush1.msra.mxu0 0.0
    %1325 = vmatprep.subr.mxu0 0.0
    %1326 = vmatpush1.msra.mxu0 0.0
    %1327 = vmatprep.subr.mxu0 0.0
    %1328 = vmatpush1.msra.mxu0 0.0
    %1329 = vmatprep.subr.mxu0 0.0
    %1330 = vmatpush1.msra.mxu0 0.0
    %1331 = vmatprep.subr.mxu0 0.0
    %1332 = vmatpush1.msra.mxu0 0.0
    %1333 = vmatprep.subr.mxu0 0.0
    %1334 = vmatpush1.msra.mxu0 0.0
    %1335 = vmatprep.subr.mxu0 0.0
    %1336 = vmatpush1.msra.mxu0 0.0
    %1337 = vmatprep.subr.mxu0 0.0
    %1338 = vmatpush1.msra.mxu0 0.0
    %1339 = vmatprep.subr.mxu0 0.0
    %1340 = vmatpush1.msra.mxu0 0.0
    %1341 = vmatprep.subr.mxu0 0.0
    %1342 = vmatpush1.msra.mxu0 0.0
    %1343 = vmatprep.subr.mxu0 0.0
    %1344 = vmatpush1.msra.mxu0 0.0
    %1345 = vmatprep.subr.mxu0 0.0
    %1346 = vmatpush1.msra.mxu0 0.0
    %1347 = vmatprep.subr.mxu0 0.0
    %1348 = vmatpush1.msra.mxu0 0.0
    %1349 = vmatprep.subr.mxu0 0.0
    %1350 = vmatpush1.msra.mxu0 0.0
    %1351 = vmatprep.subr.mxu0 0.0
    %1352 = vmatpush1.msra.mxu0 0.0
    %1353 = vmatprep.mubr.f32.mxu0 0.0
    %1354 = vmatmul.mubr.f32.gmra.mrb[0].mxu0 %v1284
    %v1355 = vpop.f32.mrb[0].mxu0
    %v1356 = vadd.f32 %v1275, %v1355
    %v1357 = vpop.f32.mrb[0].mxu0
    %1358 = vmatprep.mubr.f32.mxu0 0.0
    %1359 = vmatmul.mubr.f32.gmra.mrb[0].mxu0 %v1287
    %v1360 = vpop.f32.mrb[0].mxu0
    %v1361 = vadd.f32 %v1280, %v1360
    %v1362 = vpop.f32.mrb[0].mxu0
    %1363 = vdwg.mxu0
    %v1364 = vadd.f32 %v1356, %v769
    %v1365 = vadd.f32 %v1361, %v769
    %1366 = vst.msk [vmem:[#allocation7 + $0x10] sm:$0xff] %vm70, %v1364
    %1367 = vst.msk [vmem:[#allocation7 + $0x18] sm:$0xff] %vm70, %v1365
    // Predicated region
    $region38: #{tpu_custom_call.1} parent=1 // pred_check
      _
    $region39: #{tpu_custom_call.1} parent=1 // pred_check_branch
      %1369 = sbr.rel (0) target = $region41
    $region40: #{tpu_custom_call.1} parent=1 // pred_region
      %s1371 = ssub.s32 512, 512
      %1372 = vsyncadd [#allocation4], %s1371
      %s1373 = sshll.u32 [#allocation7], 4
      %s1374 = int_to_ptr.vmem [resolvable:$true] %s1373
      %1379 = dma.vmem_to_hbm [thread:$0]  %s1374, 512, %s7, [#allocation4], 128, 128, 8
    $region41: #{tpu_custom_call.1} parent=1 // pred_fallthru
      _
    // Predicated region
    $region42: #{tpu_custom_call.1} parent=1 // pred_check
      _
    $region43: #{tpu_custom_call.1} parent=1 // pred_check_branch
      %1381 = sbr.rel (0) target = $region45
    $region44: #{tpu_custom_call.1} parent=1 // pred_region
      %1382 = dma.done [#allocation4], 512
    $region45: #{tpu_custom_call.1} parent=1 // pred_fallthru
      _
    %1383 = vsyncpa [#allocation3], 1
    %1384 = vsyncpa [#allocation6], 1
    %1385 = vsyncpa [#allocation4], 1

</llo_original>
